<compile_context>
chip_gen: v5e
topology: v5e:2x2
jax: 0.10.0
libtpu: 0.0.40
codegen_flags: <defaults>
</compile_context>

<pallas_src>
import math
from functools import partial

import jax
import jax.numpy as jnp
from jax.experimental import pallas as pl
from jax.experimental.pallas import tpu as pltpu

_INV_SQRT2 = 0.7071067811865476


def _mlp_kernel(x_ref, w1_ref, b1_ref, w2_ref, b2_ref, o_ref, acc_ref):
    """One (tile_m, tile_h) step of  out = gelu(x @ W1 + b1) @ W2 + b2."""
    k = pl.program_id(1)

    @pl.when(k == 0)
    def _init():
        acc_ref[...] = jnp.zeros_like(acc_ref)

    # fc1 chunk on the MXU, f32 accumulation.
    h = jnp.dot(x_ref[...], w1_ref[...], preferred_element_type=jnp.float32)
    h = h + b1_ref[...]  # bias add in f32
    # Exact (erf-based) GELU, matching nn.GELU() default.
    h = 0.5 * h * (1.0 + jax.lax.erf(h * jnp.float32(_INV_SQRT2)))
    # dropout_ratio = 0.0 -> identity (inference semantics).

    # Partial fc2 for this hidden chunk; accumulate into the f32 scratch.
    acc_ref[...] += jnp.dot(
        h.astype(w2_ref.dtype), w2_ref[...], preferred_element_type=jnp.float32
    )

    @pl.when(k == pl.num_programs(1) - 1)
    def _finalize():
        o_ref[...] = (acc_ref[...] + b2_ref[...]).astype(o_ref.dtype)


@partial(jax.jit, static_argnames=("tile_m", "tile_h", "compute_dtype"))
def mlp_forward(x, w1, b1, w2, b2, *, tile_m=256, tile_h=128,
                compute_dtype=jnp.float32):
    """x: [B, N, C_in]; w1: [C_in, H]; b1: [H]; w2: [H, C_out]; b2: [C_out]."""
    B, N, C_in = x.shape
    H = w1.shape[1]
    C_out = w2.shape[1]
    out_dtype = x.dtype

    tm = int(tile_m)
    th = int(tile_h) if tile_h < H else H
    assert H % th == 0, "hidden dim must be divisible by tile_h"
    assert th == H or th % 128 == 0, "tile_h must be lane-aligned (multiple of 128)"

    # Flatten tokens; pad M up to a multiple of tile_m (sliced off at the end).
    M = B * N
    M_pad = -(-M // tm) * tm
    x2d = x.reshape(M, C_in).astype(compute_dtype)
    if M_pad != M:
        x2d = jnp.pad(x2d, ((0, M_pad - M), (0, 0)))

    w1c = w1.astype(compute_dtype)
    w2c = w2.astype(compute_dtype)
    b1f = b1.reshape(1, H).astype(jnp.float32)
    b2f = b2.reshape(1, C_out).astype(jnp.float32)

    grid = (M_pad // tm, H // th)

    # VMEM budget: double-buffered blocks + f32 accumulator + intermediate h chunk,
    # with 2x headroom, capped at 64 MiB (safe on v7x / v6e / v5e).
    cbytes = jnp.dtype(compute_dtype).itemsize
    obytes = jnp.dtype(out_dtype).itemsize
    est = (
        2 * (tm * C_in * cbytes      # x tile (double-buffered)
             + C_in * th * cbytes    # w1 chunk
             + th * 4                # b1 chunk (f32)
             + th * C_out * cbytes   # w2 chunk
             + C_out * 4             # b2 (f32)
             + tm * C_out * obytes)  # output tile
        + tm * C_out * 4             # f32 accumulator scratch
        + tm * th * 4                # intermediate h chunk (f32)
    )
    vmem_limit = int(min(max(2 * est, 8 * 1024 * 1024), 64 * 1024 * 1024))

    out = pl.pallas_call(
        _mlp_kernel,
        out_shape=jax.ShapeDtypeStruct((M_pad, C_out), out_dtype),
        grid_spec=pltpu.PrefetchScalarGridSpec(
            num_scalar_prefetch=0,
            grid=grid,
            in_specs=[
                pl.BlockSpec((tm, C_in), lambda i, k: (i, 0)),    # x tile
                pl.BlockSpec((C_in, th), lambda i, k: (0, k)),    # w1 chunk
                pl.BlockSpec((1, th), lambda i, k: (0, k)),       # b1 chunk
                pl.BlockSpec((th, C_out), lambda i, k: (k, 0)),   # w2 chunk
                pl.BlockSpec((1, C_out), lambda i, k: (0, 0)),    # b2
            ],
            out_specs=pl.BlockSpec((tm, C_out), lambda i, k: (i, 0)),
            scratch_shapes=[pltpu.VMEM((tm, C_out), jnp.float32)],
        ),
        compiler_params=pltpu.CompilerParams(
            dimension_semantics=("parallel", "arbitrary"),
            vmem_limit_bytes=vmem_limit,
        ),
    )(x2d, w1c, b1f, w2c, b2f)

    return out[:M].reshape(B, N, C_out)


def _init_params(key, in_channel, hidden_channel, out_channel, dtype=jnp.float32):
    """Deterministic init mimicking nn.Linear's U(-1/sqrt(fan_in), 1/sqrt(fan_in))."""
    k1, k2, k3, k4 = jax.random.split(key, 4)
    lim1 = 1.0 / math.sqrt(in_channel)
    lim2 = 1.0 / math.sqrt(hidden_channel)
    w1 = jax.random.uniform(k1, (in_channel, hidden_channel), dtype, -lim1, lim1)
    b1 = jax.random.uniform(k2, (hidden_channel,), dtype, -lim1, lim1)
    w2 = jax.random.uniform(k3, (hidden_channel, out_channel), dtype, -lim2, lim2)
    b2 = jax.random.uniform(k4, (out_channel,), dtype, -lim2, lim2)
    return w1, b1, w2, b2


def _reference(x, w1, b1, w2, b2):
    """Pure-JAX f32 reference: exact erf GELU, dropout=identity."""
    h = x.reshape(-1, x.shape[-1]) @ w1 + b1
    h = 0.5 * h * (1.0 + jax.lax.erf(h * jnp.float32(_INV_SQRT2)))
    y = h @ w2 + b2
    return y.reshape(*x.shape[:-1], w2.shape[1])


if __name__ == "__main__":
    # Small but lane-aligned shapes: channel dims are multiples of 128 so the output
    # stores are lane-dense and the MXU lanes are fully used; grid = (2, 2).
    B, N = 2, 256
    in_channel, hidden_channel, out_channel = 128, 256, 128

    key = jax.random.PRNGKey(0)
    kx, kp = jax.random.split(key)
    x = jax.random.normal(kx, (B, N, in_channel), dtype=jnp.float32)
    w1, b1, w2, b2 = _init_params(kp, in_channel, hidden_channel, out_channel)

    y_ref = _reference(x, w1, b1, w2, b2)

    # f32 path: exact GELU, f32 accumulation -> tight tolerance.
    y_f32 = mlp_forward(x, w1, b1, w2, b2, tile_m=256, tile_h=128,
                        compute_dtype=jnp.float32)
    y_f32 = jax.block_until_ready(y_f32)
    assert y_f32.shape == (B, N, out_channel)
    assert jnp.allclose(y_f32, y_ref, atol=2e-5, rtol=2e-5), "f32 mismatch vs reference"

    # bf16 path: MXU-friendly inputs, f32 accumulation -> relaxed tolerance
    # (expected mixed-precision behavior; see performance review).
    y_bf16 = mlp_forward(x, w1, b1, w2, b2, tile_m=256, tile_h=128,
                         compute_dtype=jnp.bfloat16)
    y_bf16 = jax.block_until_ready(y_bf16)
    assert y_bf16.shape == (B, N, out_channel)
    assert jnp.allclose(y_bf16.astype(jnp.float32), y_ref, atol=5e-2, rtol=5e-2), \
        "bf16 mismatch vs reference"

    print("KERNEL_OK")
</pallas_src>

<mosaic_0001>
module attributes {stable_mosaic.version = 11 : i64} {
  func.func @_mlp_kernel(%arg0: i32, %arg1: i32, %arg2: memref<256x128xf32, #tpu.memory_space<vmem>>, %arg3: memref<128x128xf32, #tpu.memory_space<vmem>>, %arg4: memref<1x128xf32, #tpu.memory_space<vmem>>, %arg5: memref<128x128xf32, #tpu.memory_space<vmem>>, %arg6: memref<1x128xf32, #tpu.memory_space<vmem>>, %arg7: memref<256x128xf32, #tpu.memory_space<vmem>>, %arg8: memref<256x128xf32, #tpu.memory_space<vmem>>) attributes {dimension_semantics = [#tpu.dimension_semantics<parallel>, #tpu.dimension_semantics<arbitrary>], iteration_bounds = array<i64: 2, 2>, scalar_prefetch = 0 : i64, scratch_operands = 1 : i64, tpu.core_type = #tpu.core_type<tc>, window_params = [{transform_indices = @transform_0, window_bounds = array<i64: 256, 128>}, {transform_indices = @transform_1, window_bounds = array<i64: 128, 128>}, {transform_indices = @transform_2, window_bounds = array<i64: 1, 128>}, {transform_indices = @transform_3, window_bounds = array<i64: 128, 128>}, {pipeline_mode = #tpu.pipeline_mode<synchronous>, transform_indices = @transform_4, window_bounds = array<i64: 1, 128>}, {transform_indices = @transform_5, window_bounds = array<i64: 256, 128>}]} {
    %c0_i32 = arith.constant 0 : i32
    %0 = arith.cmpi eq, %arg1, %c0_i32 : i32
    %1 = arith.extui %0 : i1 to i32
    %c0_i32_0 = arith.constant 0 : i32
    %2 = arith.cmpi ne, %1, %c0_i32_0 : i32
    scf.if %2 {
      %cst_17 = arith.constant 0.000000e+00 : f32
      %25 = vector.broadcast %cst_17 : f32 to vector<256x128xf32>
      %c0_18 = arith.constant 0 : index
      %c0_19 = arith.constant 0 : index
      %26 = vector.load %arg8[%c0_18, %c0_19] : memref<256x128xf32, #tpu.memory_space<vmem>>, vector<256x128xf32>
      tpu.vector_store %arg8[%c0_18, %c0_19], %25 {strides = array<i32>} : memref<256x128xf32, #tpu.memory_space<vmem>>, vector<256x128xf32>,
    } else {
    }
    %c0 = arith.constant 0 : index
    %c0_1 = arith.constant 0 : index
    %3 = vector.load %arg2[%c0, %c0_1] : memref<256x128xf32, #tpu.memory_space<vmem>>, vector<256x128xf32>
    %c0_2 = arith.constant 0 : index
    %c0_3 = arith.constant 0 : index
    %4 = vector.load %arg3[%c0_2, %c0_3] : memref<128x128xf32, #tpu.memory_space<vmem>>, vector<128x128xf32>
    %cst = arith.constant dense<0.000000e+00> : vector<256x128xf32>
    %5 = tpu.matmul %3, %4, %cst {dimension_numbers = #tpu.dot_dimension_numbers<[1], [0], [0], [1], [0, 0, 1, 1], [], []>} : vector<256x128xf32>, vector<128x128xf32>, vector<256x128xf32> -> vector<256x128xf32>
    %c0_4 = arith.constant 0 : index
    %c0_5 = arith.constant 0 : index
    %6 = vector.load %arg4[%c0_4, %c0_5] : memref<1x128xf32, #tpu.memory_space<vmem>>, vector<1x128xf32>
    %7 = vector.broadcast %6 : vector<1x128xf32> to vector<256x128xf32>
    %8 = arith.addf %5, %7 : vector<256x128xf32>
    %cst_6 = arith.constant 5.000000e-01 : f32
    %9 = vector.broadcast %cst_6 : f32 to vector<256x128xf32>
    %10 = arith.mulf %9, %8 : vector<256x128xf32>
    %cst_7 = arith.constant 0.707106769 : f32
    %11 = vector.broadcast %cst_7 : f32 to vector<256x128xf32>
    %12 = arith.mulf %8, %11 : vector<256x128xf32>
    %13 = math.erf %12 : vector<256x128xf32>
    %cst_8 = arith.constant 1.000000e+00 : f32
    %14 = vector.broadcast %cst_8 : f32 to vector<256x128xf32>
    %15 = arith.addf %14, %13 : vector<256x128xf32>
    %16 = arith.mulf %10, %15 : vector<256x128xf32>
    %c0_9 = arith.constant 0 : index
    %c0_10 = arith.constant 0 : index
    %17 = vector.load %arg8[%c0_9, %c0_10] : memref<256x128xf32, #tpu.memory_space<vmem>>, vector<256x128xf32>
    %c0_11 = arith.constant 0 : index
    %c0_12 = arith.constant 0 : index
    %18 = vector.load %arg5[%c0_11, %c0_12] : memref<128x128xf32, #tpu.memory_space<vmem>>, vector<128x128xf32>
    %cst_13 = arith.constant dense<0.000000e+00> : vector<256x128xf32>
    %19 = tpu.matmul %16, %18, %cst_13 {dimension_numbers = #tpu.dot_dimension_numbers<[1], [0], [0], [1], [0, 0, 1, 1], [], []>} : vector<256x128xf32>, vector<128x128xf32>, vector<256x128xf32> -> vector<256x128xf32>
    %20 = arith.addf %17, %19 : vector<256x128xf32>
    %c0_14 = arith.constant 0 : index
    %c0_15 = arith.constant 0 : index
    %21 = vector.load %arg8[%c0_14, %c0_15] : memref<256x128xf32, #tpu.memory_space<vmem>>, vector<256x128xf32>
    tpu.vector_store %arg8[%c0_14, %c0_15], %20 {strides = array<i32>} : memref<256x128xf32, #tpu.memory_space<vmem>>, vector<256x128xf32>,
    %c1_i32 = arith.constant 1 : i32
    %22 = arith.cmpi eq, %arg1, %c1_i32 : i32
    %23 = arith.extui %22 : i1 to i32
    %c0_i32_16 = arith.constant 0 : i32
    %24 = arith.cmpi ne, %23, %c0_i32_16 : i32
    scf.if %24 {
      %c0_17 = arith.constant 0 : index
      %c0_18 = arith.constant 0 : index
      %25 = vector.load %arg8[%c0_17, %c0_18] : memref<256x128xf32, #tpu.memory_space<vmem>>, vector<256x128xf32>
      %c0_19 = arith.constant 0 : index
      %c0_20 = arith.constant 0 : index
      %26 = vector.load %arg6[%c0_19, %c0_20] : memref<1x128xf32, #tpu.memory_space<vmem>>, vector<1x128xf32>
      %27 = vector.broadcast %26 : vector<1x128xf32> to vector<256x128xf32>
      %28 = arith.addf %25, %27 : vector<256x128xf32>
      %c0_21 = arith.constant 0 : index
      %c0_22 = arith.constant 0 : index
      %29 = vector.load %arg7[%c0_21, %c0_22] : memref<256x128xf32, #tpu.memory_space<vmem>>, vector<256x128xf32>
      tpu.vector_store %arg7[%c0_21, %c0_22], %28 {strides = array<i32>} : memref<256x128xf32, #tpu.memory_space<vmem>>, vector<256x128xf32>,
    } else {
    }
    return
  }
  func.func @transform_0(%arg0: i32, %arg1: i32) -> (i32, i32) {
    %c0_i32 = arith.constant 0 : i32
    %c0_i32_0 = arith.constant 0 : i32
    return %arg0, %c0_i32 : i32, i32
  }
  func.func @transform_1(%arg0: i32, %arg1: i32) -> (i32, i32) {
    %c0_i32 = arith.constant 0 : i32
    %c0_i32_0 = arith.constant 0 : i32
    return %c0_i32, %arg1 : i32, i32
  }
  func.func @transform_2(%arg0: i32, %arg1: i32) -> (i32, i32) {
    %c0_i32 = arith.constant 0 : i32
    %c0_i32_0 = arith.constant 0 : i32
    return %c0_i32, %arg1 : i32, i32
  }
  func.func @transform_3(%arg0: i32, %arg1: i32) -> (i32, i32) {
    %c0_i32 = arith.constant 0 : i32
    %c0_i32_0 = arith.constant 0 : i32
    return %arg1, %c0_i32 : i32, i32
  }
  func.func @transform_4(%arg0: i32, %arg1: i32) -> (i32, i32) {
    %c0_i32 = arith.constant 0 : i32
    %c0_i32_0 = arith.constant 0 : i32
    %c0_i32_1 = arith.constant 0 : i32
    return %c0_i32, %c0_i32_0 : i32, i32
  }
  func.func @transform_5(%arg0: i32, %arg1: i32) -> (i32, i32) {
    %c0_i32 = arith.constant 0 : i32
    %c0_i32_0 = arith.constant 0 : i32
    return %arg0, %c0_i32 : i32, i32
  }
}

</mosaic_0001>

<llo_original>
// kernel: mlp_forward.1
$region0: #{mlp_forward.1}
  #allocation0 [shape = 'u32[]', space=smem, size = 0x4, offset = 0x4, fixed_abs, tag = 'smem constant byte address 0x4 - core index']
  #allocation1 [shape = 'u32[72,128]{1,0:T(1,128)}', space=vmem, size = 0x9000, scoped, tag = 'internal scratch']
  #allocation2 [shape = 'f32[256,128]{1,0:T(8,128)}', space=vmem, size = 0x20000, scoped, tag = 'scratch operand']
  %s0 = inlined_call_operand.hbm [shape: f32[512,128], index: 0, kind: input, shape index: {}]
  %s1 = inlined_call_operand.hbm [shape: f32[128,256], index: 1, kind: input, shape index: {}]
  %s2 = inlined_call_operand.vmem [shape: f32[1,256], index: 2, kind: input, shape index: {}]
  %s3 = inlined_call_operand.hbm [shape: f32[256,128], index: 3, kind: input, shape index: {}]
  %s4 = inlined_call_operand.vmem [shape: f32[1,128], index: 4, kind: input, shape index: {}]
  %s5 = inlined_call_operand.hbm [shape: f32[512,128], index: 5, kind: output, shape index: {}]
  %s6 = sld [smem:[#allocation0]]
  $region73: #{mlp_forward.1} parent=0
    _
  %s8 = ssub.s32 1, %s6
  %s9 = scalar_select 0, %s8, %s6
  $region1: #{mlp_forward.1} parent=0
    #allocation3 [shape = 'u8[262144]{0}', space=vmem, size = 0x40000, scoped, tag = 'input window, operand 0']
    #allocation4 [shape = 's32[2]{0}', space=sflag, size = 0x8, scoped, tag = 'scoped memory for mlp_forward.1']
    #allocation5 [shape = 's32[2]{0}', space=sflag, size = 0x8, scoped, tag = 'scoped memory for mlp_forward.1']
    #allocation6 [shape = 'u8[131072]{0}', space=vmem, size = 0x20000, scoped, tag = 'input window, operand 1']
    #allocation7 [shape = 's32[2]{0}', space=sflag, size = 0x8, scoped, tag = 'scoped memory for mlp_forward.1']
    #allocation8 [shape = 'u8[131072]{0}', space=vmem, size = 0x20000, scoped, tag = 'input window, operand 3']
    #allocation9 [shape = 'u8[262144]{0}', space=vmem, size = 0x40000, scoped, tag = 'output window, operand 0']
    %10 = vsyncpa [#allocation4], 0
    %s11 = scalar_lea.sflag [#allocation4], 1
    %12 = vsyncpa %s11, 0
    %13 = vsyncpa [#allocation7], 0
    %s14 = scalar_lea.sflag [#allocation7], 1
    %15 = vsyncpa %s14, 0
    %16 = vsyncpa [#allocation5], 0
    %s17 = scalar_lea.sflag [#allocation5], 1
    %18 = vsyncpa %s17, 0
    loop: start=0, step=1, limit=6
    $region2: #{mlp_forward.1} parent=1 // loop_pre_header
      _
    $region3: #{mlp_forward.1} parent=1 // loop_header
      %s20 = sphi 0, %s24
      %p21 = scmp.ge.s32.totalorder %s20, 6
      %s27 = sphi 0, %s39
      %s28 = sphi 0, %s35
      %s29 = sphi 0, %s27
      %s30 = sphi 0, %s28
      %s31 = sphi 0, %s29
      %s32 = sphi 0, %s30
      %s42 = sphi 0, %s44
      %s45 = sphi 0, %s42
      %s46 = sphi 0, %s45
      %s62 = sphi 0, %s46
      %s68 = sphi 0, %s70
      %s71 = sphi 0, %s68
      %s72 = sphi 0, %s71
      %s88 = sphi 0, %s72
      %s94 = sphi 0, %s96
      %s97 = sphi 0, %s94
      %s98 = sphi 0, %s97
      %s114 = sphi 0, %s98
      %s120 = sphi 0, %s122
      %s123 = sphi 0, %s120
      %s124 = sphi 0, %s123
      %s140 = sphi 0, %s124
      %s144 = sphi 0, %s144
      %s146 = sphi 0, %s144
      %s147 = sphi 0, %s146
      %s161 = sphi 0, %s147
      %s167 = sphi 0, %s169
      %s170 = sphi 0, %s167
      %s171 = sphi 0, %s170
      %s187 = sphi 0, %s171
    $region4: #{mlp_forward.1} parent=1 // loop_header_branch
      %23 = sbr.rel (%p21) target = $region8
    $region5: #{mlp_forward.1} parent=1 // loop_body
      %s25 = ssub.s32 %s20, 1
      %s26 = ssub.s32 %s20, 2
      %s33 = sadd.s32 1, %s28
      %p34 = scmp.ge.s32.totalorder %s33, 2
      %s35 = scalar_select %p34, 0, %s33
      %s36 = sadd.s32 1, %s27
      %s37 = scalar_select %p34, %s36, %s27
      %p38 = scmp.ge.s32.totalorder %s37, 2
      %s39 = scalar_select %p38, 0, %s37
      %s40 = ssub.s32 %s27, %s39
      %p41 = scmp.eq.s32.totalorder %s40, 0
      %s43 = sadd.s32 %s42, 1
      %s44 = scalar_select %p41, %s42, %s43
      %p47 = pneg %p41
      %p48 = scmp.eq.s32.totalorder %s20, 3
      %p49 = por %p47, %p48
      %p50 = scmp.ne.s32.totalorder %s42, %s45
      %p51 = scmp.eq.s32.totalorder %s20, 0
      %p52 = por %p50, %p51
      %p53 = scmp.ne.s32.totalorder %s42, %s45
      %p54 = scmp.eq.s32.totalorder %s25, 3
      %p55 = por %p53, %p54
      %p56 = scmp.ne.s32.totalorder %s45, %s46
      %p57 = scmp.eq.s32.totalorder %s25, 0
      %p58 = por %p56, %p57
      %p59 = scmp.ne.s32.totalorder %s45, %s46
      %p60 = scmp.eq.s32.totalorder %s26, 3
      %p61 = por %p59, %p60
      %p63 = scmp.ne.s32.totalorder %s46, %s62
      %p64 = scmp.eq.s32.totalorder %s26, 0
      %p65 = por %p63, %p64
      %s66 = ssub.s32 %s28, %s35
      %p67 = scmp.eq.s32.totalorder %s66, 0
      %s69 = sadd.s32 %s68, 1
      %s70 = scalar_select %p67, %s68, %s69
      %p73 = pneg %p67
      %p74 = scmp.eq.s32.totalorder %s20, 3
      %p75 = por %p73, %p74
      %p76 = scmp.ne.s32.totalorder %s68, %s71
      %p77 = scmp.eq.s32.totalorder %s20, 0
      %p78 = por %p76, %p77
      %p79 = scmp.ne.s32.totalorder %s68, %s71
      %p80 = scmp.eq.s32.totalorder %s25, 3
      %p81 = por %p79, %p80
      %p82 = scmp.ne.s32.totalorder %s71, %s72
      %p83 = scmp.eq.s32.totalorder %s25, 0
      %p84 = por %p82, %p83
      %p85 = scmp.ne.s32.totalorder %s71, %s72
      %p86 = scmp.eq.s32.totalorder %s26, 3
      %p87 = por %p85, %p86
      %p89 = scmp.ne.s32.totalorder %s72, %s88
      %p90 = scmp.eq.s32.totalorder %s26, 0
      %p91 = por %p89, %p90
      %s92 = ssub.s32 %s28, %s35
      %p93 = scmp.eq.s32.totalorder %s92, 0
      %s95 = sadd.s32 %s94, 1
      %s96 = scalar_select %p93, %s94, %s95
      %p99 = pneg %p93
      %p100 = scmp.eq.s32.totalorder %s20, 3
      %p101 = por %p99, %p100
      %p102 = scmp.ne.s32.totalorder %s94, %s97
      %p103 = scmp.eq.s32.totalorder %s20, 0
      %p104 = por %p102, %p103
      %p105 = scmp.ne.s32.totalorder %s94, %s97
      %p106 = scmp.eq.s32.totalorder %s25, 3
      %p107 = por %p105, %p106
      %p108 = scmp.ne.s32.totalorder %s97, %s98
      %p109 = scmp.eq.s32.totalorder %s25, 0
      %p110 = por %p108, %p109
      %p111 = scmp.ne.s32.totalorder %s97, %s98
      %p112 = scmp.eq.s32.totalorder %s26, 3
      %p113 = por %p111, %p112
      %p115 = scmp.ne.s32.totalorder %s98, %s114
      %p116 = scmp.eq.s32.totalorder %s26, 0
      %p117 = por %p115, %p116
      %s118 = ssub.s32 %s28, %s35
      %p119 = scmp.eq.s32.totalorder %s118, 0
      %s121 = sadd.s32 %s120, 1
      %s122 = scalar_select %p119, %s120, %s121
      %p125 = pneg %p119
      %p126 = scmp.eq.s32.totalorder %s20, 3
      %p127 = por %p125, %p126
      %p128 = scmp.ne.s32.totalorder %s120, %s123
      %p129 = scmp.eq.s32.totalorder %s20, 0
      %p130 = por %p128, %p129
      %p131 = scmp.ne.s32.totalorder %s120, %s123
      %p132 = scmp.eq.s32.totalorder %s25, 3
      %p133 = por %p131, %p132
      %p134 = scmp.ne.s32.totalorder %s123, %s124
      %p135 = scmp.eq.s32.totalorder %s25, 0
      %p136 = por %p134, %p135
      %p137 = scmp.ne.s32.totalorder %s123, %s124
      %p138 = scmp.eq.s32.totalorder %s26, 3
      %p139 = por %p137, %p138
      %p141 = scmp.ne.s32.totalorder %s124, %s140
      %p142 = scmp.eq.s32.totalorder %s26, 0
      %p143 = por %p141, %p142
      %s145 = sadd.s32 %s144, 1
      %p148 = scmp.eq.s32.totalorder %s20, 3
      %p149 = scmp.ne.s32.totalorder %s144, %s146
      %p150 = scmp.eq.s32.totalorder %s20, 0
      %p151 = por %p149, %p150
      %p152 = scmp.ne.s32.totalorder %s144, %s146
      %p153 = scmp.eq.s32.totalorder %s25, 3
      %p154 = por %p152, %p153
      %p155 = scmp.ne.s32.totalorder %s146, %s147
      %p156 = scmp.eq.s32.totalorder %s25, 0
      %p157 = por %p155, %p156
      %p158 = scmp.ne.s32.totalorder %s146, %s147
      %p159 = scmp.eq.s32.totalorder %s26, 3
      %p160 = por %p158, %p159
      %p162 = scmp.ne.s32.totalorder %s147, %s161
      %p163 = scmp.eq.s32.totalorder %s26, 0
      %p164 = por %p162, %p163
      %s165 = ssub.s32 %s27, %s39
      %p166 = scmp.eq.s32.totalorder %s165, 0
      %s168 = sadd.s32 %s167, 1
      %s169 = scalar_select %p166, %s167, %s168
      %p172 = pneg %p166
      %p173 = scmp.eq.s32.totalorder %s20, 3
      %p174 = por %p172, %p173
      %p175 = scmp.ne.s32.totalorder %s167, %s170
      %p176 = scmp.eq.s32.totalorder %s20, 0
      %p177 = por %p175, %p176
      %p178 = scmp.ne.s32.totalorder %s167, %s170
      %p179 = scmp.eq.s32.totalorder %s25, 3
      %p180 = por %p178, %p179
      %p181 = scmp.ne.s32.totalorder %s170, %s171
      %p182 = scmp.eq.s32.totalorder %s25, 0
      %p183 = por %p181, %p182
      %p184 = scmp.ne.s32.totalorder %s170, %s171
      %p185 = scmp.eq.s32.totalorder %s26, 3
      %p186 = por %p184, %p185
      %p188 = scmp.ne.s32.totalorder %s171, %s187
      %p189 = scmp.eq.s32.totalorder %s26, 0
      %p190 = por %p188, %p189
      %p191 = scmp.le.s32.totalorder 1, %s20
      %p192 = scmp.lt.s32.totalorder %s20, 5
      %p193 = pnand %p191, %p192
      %p194 = pneg %p193
      // Predicated region
      $region9: #{mlp_forward.1} parent=5 // pred_check
        _
      $region10: #{mlp_forward.1} parent=5 // pred_check_branch
        %196 = sbr.rel (%p193) target = $region12
      $region11: #{mlp_forward.1} parent=5 // pred_region
        %s197 = ssub.s32 %s20, 1
        // Predicated region
        $region13: #{mlp_forward.1} parent=11 // pred_check
          %p198 = pneg %p157
        $region14: #{mlp_forward.1} parent=11 // pred_check_branch
          %200 = sbr.rel (%p198) target = $region16
        $region15: #{mlp_forward.1} parent=11 // pred_region
          _
        $region16: #{mlp_forward.1} parent=11 // pred_fallthru
          _
      $region12: #{mlp_forward.1} parent=5 // pred_fallthru
        _
      %p201 = scmp.lt.s32.totalorder %s20, 4
      // Predicated region
      $region17: #{mlp_forward.1} parent=5 // pred_check
        %p202 = pneg %p201
      $region18: #{mlp_forward.1} parent=5 // pred_check_branch
        %204 = sbr.rel (%p202) target = $region20
      $region19: #{mlp_forward.1} parent=5 // pred_region
        // Predicated region
        $region21: #{mlp_forward.1} parent=19 // pred_check
          %p205 = pneg %p52
        $region22: #{mlp_forward.1} parent=19 // pred_check_branch
          %207 = sbr.rel (%p205) target = $region24
        $region23: #{mlp_forward.1} parent=19 // pred_region
          %s208 = sand.u32 %s42, 1
          %s209 = scalar_lea.sflag [#allocation4], %s208
          %s210 = sand.u32 %s42, 1
          %s211 = smul.addr %s210, 256
          %s212 = scalar_lea.vmem [#allocation3], %s211
          %s213 = smul.u32 32, %s27
          %215 = vsyncadd %s209, 0
          %s216 = smul.addr %s213, 8
          %s217 = scalar_lea.hbm %s0, %s216
          %s218 = sshll.u32 %s217, 4
          %s219 = int_to_ptr.hbm [resolvable:$true] %s218
          %s220 = sshll.u32 %s212, 4
          %s221 = int_to_ptr.vmem [resolvable:$true] %s220
          %226 = dma.hbm_to_vmem [thread:$0]  %s219, 4096, %s221, %s209, 128, 128, 8
        $region24: #{mlp_forward.1} parent=19 // pred_fallthru
          _
        // Predicated region
        $region25: #{mlp_forward.1} parent=19 // pred_check
          %p227 = pneg %p78
        $region26: #{mlp_forward.1} parent=19 // pred_check_branch
          %229 = sbr.rel (%p227) target = $region28
        $region27: #{mlp_forward.1} parent=19 // pred_region
          %s230 = sand.u32 %s20, 1
          %s231 = scalar_lea.sflag [#allocation7], %s230
          %s232 = sand.u32 %s68, 1
          %s233 = smul.addr %s232, 128
          %s234 = scalar_lea.vmem [#allocation6], %s233
          %236 = vsyncadd %s231, 0
          %s237 = smul.addr %s28, 8
          %s238 = scalar_lea.hbm %s1, %s237
          %s239 = sshll.u32 %s238, 4
          %s240 = int_to_ptr.hbm [resolvable:$true] %s239
          %s241 = sshll.u32 %s234, 4
          %s242 = int_to_ptr.vmem [resolvable:$true] %s241
          %247 = dma.hbm_to_vmem [thread:$0]  %s240, 2048, %s242, %s231, 256, 128, 8
        $region28: #{mlp_forward.1} parent=19 // pred_fallthru
          _
        // Predicated region
        $region29: #{mlp_forward.1} parent=19 // pred_check
          %p248 = pneg %p104
        $region30: #{mlp_forward.1} parent=19 // pred_check_branch
          %250 = sbr.rel (%p248) target = $region32
        $region31: #{mlp_forward.1} parent=19 // pred_region
          %p251 = scmp.lt.s32.totalorder %s28, 1
          %s252 = scalar_select %p251, %s28, 1
          %s253 = scalar_lea.vmem %s2, %s252
        $region32: #{mlp_forward.1} parent=19 // pred_fallthru
          _
        // Predicated region
        $region33: #{mlp_forward.1} parent=19 // pred_check
          %p254 = pneg %p130
        $region34: #{mlp_forward.1} parent=19 // pred_check_branch
          %256 = sbr.rel (%p254) target = $region36
        $region35: #{mlp_forward.1} parent=19 // pred_region
          %s257 = sand.u32 %s20, 1
          %s258 = scalar_lea.sflag [#allocation7], %s257
          %s259 = sand.u32 %s120, 1
          %s260 = smul.addr %s259, 128
          %s261 = scalar_lea.vmem [#allocation8], %s260
          %s262 = smul.u32 16, %s28
          %264 = vsyncadd %s258, 0
          %s265 = smul.addr %s262, 8
          %s266 = scalar_lea.hbm %s3, %s265
          %s267 = sshll.u32 %s266, 4
          %s268 = int_to_ptr.hbm [resolvable:$true] %s267
          %s269 = sshll.u32 %s261, 4
          %s270 = int_to_ptr.vmem [resolvable:$true] %s269
          %275 = dma.hbm_to_vmem [thread:$0]  %s268, 2048, %s270, %s258, 128, 128, 8
        $region36: #{mlp_forward.1} parent=19 // pred_fallthru
          _
      $region20: #{mlp_forward.1} parent=5 // pred_fallthru
        _
      %p276 = scmp.le.s32.totalorder 1, %s20
      %p277 = scmp.lt.s32.totalorder %s20, 5
      %p278 = pnand %p276, %p277
      %p279 = pneg %p278
      // Predicated region
      $region37: #{mlp_forward.1} parent=5 // pred_check
        _
      $region38: #{mlp_forward.1} parent=5 // pred_check_branch
        %281 = sbr.rel (%p278) target = $region40
      $region39: #{mlp_forward.1} parent=5 // pred_region
        %s282 = ssub.s32 %s20, 1
        %s283 = sand.u32 %s45, 1
        %s284 = scalar_lea.sflag [#allocation4], %s283
        %s285 = sand.u32 %s45, 1
        %s286 = smul.addr %s285, 256
        %s287 = scalar_lea.vmem [#allocation3], %s286
        // Predicated region
        $region41: #{mlp_forward.1} parent=39 // pred_check
          %p288 = pneg %p58
        $region42: #{mlp_forward.1} parent=39 // pred_check_branch
          %290 = sbr.rel (%p288) target = $region44
        $region43: #{mlp_forward.1} parent=39 // pred_region
          %292 = dma.done %s284, 4096
        $region44: #{mlp_forward.1} parent=39 // pred_fallthru
          _
        %s293 = sand.u32 %s25, 1
        %s294 = scalar_lea.sflag [#allocation7], %s293
        %s295 = sand.u32 %s71, 1
        %s296 = smul.addr %s295, 128
        %s297 = scalar_lea.vmem [#allocation6], %s296
        // Predicated region
        $region45: #{mlp_forward.1} parent=39 // pred_check
          %p298 = pneg %p84
        $region46: #{mlp_forward.1} parent=39 // pred_check_branch
          %300 = sbr.rel (%p298) target = $region48
        $region47: #{mlp_forward.1} parent=39 // pred_region
          %302 = dma.done %s294, 2048
        $region48: #{mlp_forward.1} parent=39 // pred_fallthru
          _
        %s303 = sand.u32 %s25, 1
        %s304 = scalar_lea.sflag [#allocation7], %s303
        %s305 = sand.u32 %s123, 1
        %s306 = smul.addr %s305, 128
        %s307 = scalar_lea.vmem [#allocation8], %s306
        // Predicated region
        $region49: #{mlp_forward.1} parent=39 // pred_check
          %p308 = pneg %p136
        $region50: #{mlp_forward.1} parent=39 // pred_check_branch
          %310 = sbr.rel (%p308) target = $region52
        $region51: #{mlp_forward.1} parent=39 // pred_region
          %312 = dma.done %s304, 2048
        $region52: #{mlp_forward.1} parent=39 // pred_fallthru
          _
        %s313 = sand.u32 %s45, 1
        %s314 = scalar_lea.sflag [#allocation4], %s313
        %s315 = sand.u32 %s45, 1
        %s316 = smul.addr %s315, 256
        %s317 = scalar_lea.vmem [#allocation3], %s316
        %p318 = pneg %p58
        %p319 = pneg %p55
        %s320 = sand.u32 %s25, 1
        %s321 = scalar_lea.sflag [#allocation7], %s320
        %s322 = sand.u32 %s71, 1
        %s323 = smul.addr %s322, 128
        %s324 = scalar_lea.vmem [#allocation6], %s323
        %p325 = pneg %p84
        %p326 = pneg %p81
        %p327 = scmp.lt.s32.totalorder %s30, 1
        %s328 = scalar_select %p327, %s30, 1
        %s329 = scalar_lea.vmem %s2, %s328
        %p330 = pneg %p110
        %p331 = pneg %p107
        %s332 = sand.u32 %s25, 1
        %s333 = scalar_lea.sflag [#allocation7], %s332
        %s334 = sand.u32 %s123, 1
        %s335 = smul.addr %s334, 128
        %s336 = scalar_lea.vmem [#allocation8], %s335
        %p337 = pneg %p136
        %p338 = pneg %p133
        %p339 = pneg %p157
        %p340 = pneg %p154
        %p341 = pneg %p183
        %p342 = pneg %p180
        %s343 = sand.u32 %s170, 1
        %s344 = scalar_lea.sflag [#allocation5], %s343
        %s345 = sand.u32 %s170, 1
        %s346 = smul.addr %s345, 256
        %s347 = scalar_lea.vmem [#allocation9], %s346
        %s348 = smul.u32 32, %s29
        %p349 = scmp.lt.s32.totalorder %s30, 1
        %s350 = scalar_select %p349, %s30, 1
        %s351 = scalar_lea.vmem %s2, %s350
        %s352 = smul.u32 16, %s30
        %s353 = smul.u32 32, %s29
        %p354 = scmp.eq.s32.totalorder %s30, 0
        // Predicated region
        $region53: #{mlp_forward.1} parent=39 // pred_check
          %p355 = pneg %p354
        $region54: #{mlp_forward.1} parent=39 // pred_check_branch
          %357 = sbr.rel (%p355) target = $region56
        $region55: #{mlp_forward.1} parent=39 // pred_region
          %358 = vst [vmem:[#allocation2] sm:$0xff] 0.0
          %359 = vst [vmem:[#allocation2 + $0x8] sm:$0xff] 0.0
          %360 = vst [vmem:[#allocation2 + $0x10] sm:$0xff] 0.0
          %361 = vst [vmem:[#allocation2 + $0x18] sm:$0xff] 0.0
          %362 = vst [vmem:[#allocation2 + $0x20] sm:$0xff] 0.0
          %363 = vst [vmem:[#allocation2 + $0x28] sm:$0xff] 0.0
          %364 = vst [vmem:[#allocation2 + $0x30] sm:$0xff] 0.0
          %365 = vst [vmem:[#allocation2 + $0x38] sm:$0xff] 0.0
          %366 = vst [vmem:[#allocation2 + $0x40] sm:$0xff] 0.0
          %367 = vst [vmem:[#allocation2 + $0x48] sm:$0xff] 0.0
          %368 = vst [vmem:[#allocation2 + $0x50] sm:$0xff] 0.0
          %369 = vst [vmem:[#allocation2 + $0x58] sm:$0xff] 0.0
          %370 = vst [vmem:[#allocation2 + $0x60] sm:$0xff] 0.0
          %371 = vst [vmem:[#allocation2 + $0x68] sm:$0xff] 0.0
          %372 = vst [vmem:[#allocation2 + $0x70] sm:$0xff] 0.0
          %373 = vst [vmem:[#allocation2 + $0x78] sm:$0xff] 0.0
          %374 = vst [vmem:[#allocation2 + $0x80] sm:$0xff] 0.0
          %375 = vst [vmem:[#allocation2 + $0x88] sm:$0xff] 0.0
          %376 = vst [vmem:[#allocation2 + $0x90] sm:$0xff] 0.0
          %377 = vst [vmem:[#allocation2 + $0x98] sm:$0xff] 0.0
          %378 = vst [vmem:[#allocation2 + $0xa0] sm:$0xff] 0.0
          %379 = vst [vmem:[#allocation2 + $0xa8] sm:$0xff] 0.0
          %380 = vst [vmem:[#allocation2 + $0xb0] sm:$0xff] 0.0
          %381 = vst [vmem:[#allocation2 + $0xb8] sm:$0xff] 0.0
          %382 = vst [vmem:[#allocation2 + $0xc0] sm:$0xff] 0.0
          %383 = vst [vmem:[#allocation2 + $0xc8] sm:$0xff] 0.0
          %384 = vst [vmem:[#allocation2 + $0xd0] sm:$0xff] 0.0
          %385 = vst [vmem:[#allocation2 + $0xd8] sm:$0xff] 0.0
          %386 = vst [vmem:[#allocation2 + $0xe0] sm:$0xff] 0.0
          %387 = vst [vmem:[#allocation2 + $0xe8] sm:$0xff] 0.0
          %388 = vst [vmem:[#allocation2 + $0xf0] sm:$0xff] 0.0
          %389 = vst [vmem:[#allocation2 + $0xf8] sm:$0xff] 0.0
        $region56: #{mlp_forward.1} parent=39 // pred_fallthru
          _
        %v390 = vld [vmem:[%s287] sm:$0xff]
        %v391 = vld [vmem:[%s287 + $0x8] sm:$0xff]
        %v392 = vld [vmem:[%s287 + $0x10] sm:$0xff]
        %v393 = vld [vmem:[%s287 + $0x18] sm:$0xff]
        %v394 = vld [vmem:[%s287 + $0x20] sm:$0xff]
        %v395 = vld [vmem:[%s287 + $0x28] sm:$0xff]
        %v396 = vld [vmem:[%s287 + $0x30] sm:$0xff]
        %v397 = vld [vmem:[%s287 + $0x38] sm:$0xff]
        %v398 = vld [vmem:[%s287 + $0x40] sm:$0xff]
        %v399 = vld [vmem:[%s287 + $0x48] sm:$0xff]
        %v400 = vld [vmem:[%s287 + $0x50] sm:$0xff]
        %v401 = vld [vmem:[%s287 + $0x58] sm:$0xff]
        %v402 = vld [vmem:[%s287 + $0x60] sm:$0xff]
        %v403 = vld [vmem:[%s287 + $0x68] sm:$0xff]
        %v404 = vld [vmem:[%s287 + $0x70] sm:$0xff]
        %v405 = vld [vmem:[%s287 + $0x78] sm:$0xff]
        %v406 = vld [vmem:[%s287 + $0x80] sm:$0xff]
        %v407 = vld [vmem:[%s287 + $0x88] sm:$0xff]
        %v408 = vld [vmem:[%s287 + $0x90] sm:$0xff]
        %v409 = vld [vmem:[%s287 + $0x98] sm:$0xff]
        %v410 = vld [vmem:[%s287 + $0xa0] sm:$0xff]
        %v411 = vld [vmem:[%s287 + $0xa8] sm:$0xff]
        %v412 = vld [vmem:[%s287 + $0xb0] sm:$0xff]
        %v413 = vld [vmem:[%s287 + $0xb8] sm:$0xff]
        %v414 = vld [vmem:[%s287 + $0xc0] sm:$0xff]
        %v415 = vld [vmem:[%s287 + $0xc8] sm:$0xff]
        %v416 = vld [vmem:[%s287 + $0xd0] sm:$0xff]
        %v417 = vld [vmem:[%s287 + $0xd8] sm:$0xff]
        %v418 = vld [vmem:[%s287 + $0xe0] sm:$0xff]
        %v419 = vld [vmem:[%s287 + $0xe8] sm:$0xff]
        %v420 = vld [vmem:[%s287 + $0xf0] sm:$0xff]
        %v421 = vld [vmem:[%s287 + $0xf8] sm:$0xff]
        %v422 = vld [vmem:[%s297] sm:$0xff]
        %v423 = vld [vmem:[%s297 + $0x8] sm:$0xff]
        %v424 = vld [vmem:[%s297 + $0x10] sm:$0xff]
        %v425 = vld [vmem:[%s297 + $0x18] sm:$0xff]
        %v426 = vld [vmem:[%s297 + $0x20] sm:$0xff]
        %v427 = vld [vmem:[%s297 + $0x28] sm:$0xff]
        %v428 = vld [vmem:[%s297 + $0x30] sm:$0xff]
        %v429 = vld [vmem:[%s297 + $0x38] sm:$0xff]
        %v430 = vld [vmem:[%s297 + $0x40] sm:$0xff]
        %v431 = vld [vmem:[%s297 + $0x48] sm:$0xff]
        %v432 = vld [vmem:[%s297 + $0x50] sm:$0xff]
        %v433 = vld [vmem:[%s297 + $0x58] sm:$0xff]
        %v434 = vld [vmem:[%s297 + $0x60] sm:$0xff]
        %v435 = vld [vmem:[%s297 + $0x68] sm:$0xff]
        %v436 = vld [vmem:[%s297 + $0x70] sm:$0xff]
        %v437 = vld [vmem:[%s297 + $0x78] sm:$0xff]
        %v438 = vld [vmem:[%s351] sm:$0x1]
        %v440 = vperm.slane %v438, 0
        %442 = vmatpush.msra.mxu0 %v437
        %443 = vmatpush.msra.mxu0 %v436
        %444 = vmatpush.msra.mxu0 %v435
        %445 = vmatpush.msra.mxu0 %v434
        %446 = vmatpush.msra.mxu0 %v433
        %447 = vmatpush.msra.mxu0 %v432
        %448 = vmatpush.msra.mxu0 %v431
        %449 = vmatpush.msra.mxu0 %v430
        %450 = vmatpush.msra.mxu0 %v429
        %451 = vmatpush.msra.mxu0 %v428
        %452 = vmatpush.msra.mxu0 %v427
        %453 = vmatpush.msra.mxu0 %v426
        %454 = vmatpush.msra.mxu0 %v425
        %455 = vmatpush.msra.mxu0 %v424
        %456 = vmatpush.msra.mxu0 %v423
        %457 = vmatpush.msra.mxu0 %v422
        %458 = vmatmul.f32.gmra.mxu0 %v390
        %v459 = vpop.f32.mrf.mxu0
        %v460 = vadd.f32 %v440, %v459
        %461 = vmatmul.f32.gmra.mxu0 %v391
        %v462 = vpop.f32.mrf.mxu0
        %v463 = vadd.f32 %v440, %v462
        %464 = vmatmul.f32.gmra.mxu0 %v392
        %v465 = vpop.f32.mrf.mxu0
        %v466 = vadd.f32 %v440, %v465
        %467 = vmatmul.f32.gmra.mxu0 %v393
        %v468 = vpop.f32.mrf.mxu0
        %v469 = vadd.f32 %v440, %v468
        %470 = vmatmul.f32.gmra.mxu0 %v394
        %v471 = vpop.f32.mrf.mxu0
        %v472 = vadd.f32 %v440, %v471
        %473 = vmatmul.f32.gmra.mxu0 %v395
        %v474 = vpop.f32.mrf.mxu0
        %v475 = vadd.f32 %v440, %v474
        %476 = vmatmul.f32.gmra.mxu0 %v396
        %v477 = vpop.f32.mrf.mxu0
        %v478 = vadd.f32 %v440, %v477
        %479 = vmatmul.f32.gmra.mxu0 %v397
        %v480 = vpop.f32.mrf.mxu0
        %v481 = vadd.f32 %v440, %v480
        %482 = vmatmul.f32.gmra.mxu0 %v398
        %v483 = vpop.f32.mrf.mxu0
        %v484 = vadd.f32 %v440, %v483
        %485 = vmatmul.f32.gmra.mxu0 %v399
        %v486 = vpop.f32.mrf.mxu0
        %v487 = vadd.f32 %v440, %v486
        %488 = vmatmul.f32.gmra.mxu0 %v400
        %v489 = vpop.f32.mrf.mxu0
        %v490 = vadd.f32 %v440, %v489
        %491 = vmatmul.f32.gmra.mxu0 %v401
        %v492 = vpop.f32.mrf.mxu0
        %v493 = vadd.f32 %v440, %v492
        %494 = vmatmul.f32.gmra.mxu0 %v402
        %v495 = vpop.f32.mrf.mxu0
        %v496 = vadd.f32 %v440, %v495
        %497 = vmatmul.f32.gmra.mxu0 %v403
        %v498 = vpop.f32.mrf.mxu0
        %v499 = vadd.f32 %v440, %v498
        %500 = vmatmul.f32.gmra.mxu0 %v404
        %v501 = vpop.f32.mrf.mxu0
        %v502 = vadd.f32 %v440, %v501
        %503 = vmatmul.f32.gmra.mxu0 %v405
        %v504 = vpop.f32.mrf.mxu0
        %v505 = vadd.f32 %v440, %v504
        %506 = vmatmul.f32.gmra.mxu0 %v406
        %v507 = vpop.f32.mrf.mxu0
        %v508 = vadd.f32 %v440, %v507
        %509 = vmatmul.f32.gmra.mxu0 %v407
        %v510 = vpop.f32.mrf.mxu0
        %v511 = vadd.f32 %v440, %v510
        %512 = vmatmul.f32.gmra.mxu0 %v408
        %v513 = vpop.f32.mrf.mxu0
        %v514 = vadd.f32 %v440, %v513
        %515 = vmatmul.f32.gmra.mxu0 %v409
        %v516 = vpop.f32.mrf.mxu0
        %v517 = vadd.f32 %v440, %v516
        %518 = vmatmul.f32.gmra.mxu0 %v410
        %v519 = vpop.f32.mrf.mxu0
        %v520 = vadd.f32 %v440, %v519
        %521 = vmatmul.f32.gmra.mxu0 %v411
        %v522 = vpop.f32.mrf.mxu0
        %v523 = vadd.f32 %v440, %v522
        %524 = vmatmul.f32.gmra.mxu0 %v412
        %v525 = vpop.f32.mrf.mxu0
        %v526 = vadd.f32 %v440, %v525
        %527 = vmatmul.f32.gmra.mxu0 %v413
        %v528 = vpop.f32.mrf.mxu0
        %v529 = vadd.f32 %v440, %v528
        %530 = vmatmul.f32.gmra.mxu0 %v414
        %v531 = vpop.f32.mrf.mxu0
        %v532 = vadd.f32 %v440, %v531
        %533 = vmatmul.f32.gmra.mxu0 %v415
        %v534 = vpop.f32.mrf.mxu0
        %v535 = vadd.f32 %v440, %v534
        %536 = vmatmul.f32.gmra.mxu0 %v416
        %v537 = vpop.f32.mrf.mxu0
        %v538 = vadd.f32 %v440, %v537
        %539 = vmatmul.f32.gmra.mxu0 %v417
        %v540 = vpop.f32.mrf.mxu0
        %v541 = vadd.f32 %v440, %v540
        %542 = vmatmul.f32.gmra.mxu0 %v418
        %v543 = vpop.f32.mrf.mxu0
        %v544 = vadd.f32 %v440, %v543
        %545 = vmatmul.f32.gmra.mxu0 %v419
        %v546 = vpop.f32.mrf.mxu0
        %v547 = vadd.f32 %v440, %v546
        %548 = vmatmul.f32.gmra.mxu0 %v420
        %v549 = vpop.f32.mrf.mxu0
        %v550 = vadd.f32 %v440, %v549
        %551 = vmatmul.f32.gmra.mxu0 %v421
        %v552 = vpop.f32.mrf.mxu0
        %v553 = vadd.f32 %v440, %v552
        %554 = vdwg.mxu0
        %v555 = vmul.f32 %v460, 0.5
        %v556 = vmul.f32 %v463, 0.5
        %v557 = vmul.f32 %v466, 0.5
        %v558 = vmul.f32 %v469, 0.5
        %v559 = vmul.f32 %v472, 0.5
        %v560 = vmul.f32 %v475, 0.5
        %v561 = vmul.f32 %v478, 0.5
        %v562 = vmul.f32 %v481, 0.5
        %v563 = vmul.f32 %v484, 0.5
        %v564 = vmul.f32 %v487, 0.5
        %v565 = vmul.f32 %v490, 0.5
        %v566 = vmul.f32 %v493, 0.5
        %v567 = vmul.f32 %v496, 0.5
        %v568 = vmul.f32 %v499, 0.5
        %v569 = vmul.f32 %v502, 0.5
        %v570 = vmul.f32 %v505, 0.5
        %v571 = vmul.f32 %v508, 0.5
        %v572 = vmul.f32 %v511, 0.5
        %v573 = vmul.f32 %v514, 0.5
        %v574 = vmul.f32 %v517, 0.5
        %v575 = vmul.f32 %v520, 0.5
        %v576 = vmul.f32 %v523, 0.5
        %v577 = vmul.f32 %v526, 0.5
        %v578 = vmul.f32 %v529, 0.5
        %v579 = vmul.f32 %v532, 0.5
        %v580 = vmul.f32 %v535, 0.5
        %v581 = vmul.f32 %v538, 0.5
        %v582 = vmul.f32 %v541, 0.5
        %v583 = vmul.f32 %v544, 0.5
        %v584 = vmul.f32 %v547, 0.5
        %v585 = vmul.f32 %v550, 0.5
        %v586 = vmul.f32 %v553, 0.5
        %v587 = vmul.f32 %v460, 0.70710677
        %v588 = vmul.f32 %v463, 0.70710677
        %v589 = vmul.f32 %v466, 0.70710677
        %v590 = vmul.f32 %v469, 0.70710677
        %v591 = vmul.f32 %v472, 0.70710677
        %v592 = vmul.f32 %v475, 0.70710677
        %v593 = vmul.f32 %v478, 0.70710677
        %v594 = vmul.f32 %v481, 0.70710677
        %v595 = vmul.f32 %v484, 0.70710677
        %v596 = vmul.f32 %v487, 0.70710677
        %v597 = vmul.f32 %v490, 0.70710677
        %v598 = vmul.f32 %v493, 0.70710677
        %v599 = vmul.f32 %v496, 0.70710677
        %v600 = vmul.f32 %v499, 0.70710677
        %v601 = vmul.f32 %v502, 0.70710677
        %v602 = vmul.f32 %v505, 0.70710677
        %v603 = vmul.f32 %v508, 0.70710677
        %v604 = vmul.f32 %v511, 0.70710677
        %v605 = vmul.f32 %v514, 0.70710677
        %v606 = vmul.f32 %v517, 0.70710677
        %v607 = vmul.f32 %v520, 0.70710677
        %v608 = vmul.f32 %v523, 0.70710677
        %v609 = vmul.f32 %v526, 0.70710677
        %v610 = vmul.f32 %v529, 0.70710677
        %v611 = vmul.f32 %v532, 0.70710677
        %v612 = vmul.f32 %v535, 0.70710677
        %v613 = vmul.f32 %v538, 0.70710677
        %v614 = vmul.f32 %v541, 0.70710677
        %v615 = vmul.f32 %v544, 0.70710677
        %v616 = vmul.f32 %v547, 0.70710677
        %v617 = vmul.f32 %v550, 0.70710677
        %v618 = vmul.f32 %v553, 0.70710677
        %v619 = vmul.f32 %v587, %v587
        %v620 = vmin.f32 16.0, %v619
        %v621 = vmul.f32 %v620, 2.1237322e-06
        %v622 = vadd.f32 %v621, 0.00028619796
        %v623 = vmul.f32 %v620, %v622
        %v624 = vadd.f32 %v623, 0.0036580483
        %v625 = vmul.f32 %v620, %v624
        %v626 = vadd.f32 %v625, 0.05243302
        %v627 = vmul.f32 %v620, %v626
        %v628 = vadd.f32 %v627, 0.18741608
        %v629 = vmul.f32 %v620, %v628
        %v630 = vadd.f32 %v629, 1.1283791
        %v631 = vmul.f32 %v587, %v630
        %v632 = vmul.f32 %v620, 3.8918573e-05
        %v633 = vadd.f32 %v632, 0.001143296
        %v634 = vmul.f32 %v620, %v633
        %v635 = vadd.f32 %v634, 0.014752088
        %v636 = vmul.f32 %v620, %v635
        %v637 = vadd.f32 %v636, 0.112945676
        %v638 = vmul.f32 %v620, %v637
        %v639 = vadd.f32 %v638, 0.4994258
        %v640 = vmul.f32 %v620, %v639
        %v641 = vadd.f32 %v640, 1.0
        %v642 = vrcp.pop %v641
        %v643 = vmul.f32 %v641, %v642
        %v644 = vsub.f32 1.0, %v643
        %v645 = vmul.f32 %v642, %v644
        %v646 = vadd.f32 %v642, %v645
        %vm647 = vweird.f32 %v641
        %vm648 = vweird.f32 %v642
        %vm649 = vmor %vm647, %vm648
        %v650 = vsel %vm649, %v642, %v646
        %v651 = vand.u32 2147483647, %v641
        %vm652 = vcmp.eq.f32.partialorder %v651, 8.507059e+37
        %v653 = vand.u32 %v641, 2147483648
        %v654 = vor.u32 1.1754944e-38, %v653
        %v655 = vsel %vm652, %v654, %v650
        %v656 = vmul.f32 %v631, %v655
        %v657 = vmin.f32 %v656, 1.0
        %v658 = vmax.f32 %v657, -1.0
        %v659 = vmul.f32 %v588, %v588
        %v660 = vmin.f32 16.0, %v659
        %v661 = vmul.f32 %v660, 2.1237322e-06
        %v662 = vadd.f32 %v661, 0.00028619796
        %v663 = vmul.f32 %v660, %v662
        %v664 = vadd.f32 %v663, 0.0036580483
        %v665 = vmul.f32 %v660, %v664
        %v666 = vadd.f32 %v665, 0.05243302
        %v667 = vmul.f32 %v660, %v666
        %v668 = vadd.f32 %v667, 0.18741608
        %v669 = vmul.f32 %v660, %v668
        %v670 = vadd.f32 %v669, 1.1283791
        %v671 = vmul.f32 %v588, %v670
        %v672 = vmul.f32 %v660, 3.8918573e-05
        %v673 = vadd.f32 %v672, 0.001143296
        %v674 = vmul.f32 %v660, %v673
        %v675 = vadd.f32 %v674, 0.014752088
        %v676 = vmul.f32 %v660, %v675
        %v677 = vadd.f32 %v676, 0.112945676
        %v678 = vmul.f32 %v660, %v677
        %v679 = vadd.f32 %v678, 0.4994258
        %v680 = vmul.f32 %v660, %v679
        %v681 = vadd.f32 %v680, 1.0
        %v682 = vrcp.pop %v681
        %v683 = vmul.f32 %v681, %v682
        %v684 = vsub.f32 1.0, %v683
        %v685 = vmul.f32 %v682, %v684
        %v686 = vadd.f32 %v682, %v685
        %vm687 = vweird.f32 %v681
        %vm688 = vweird.f32 %v682
        %vm689 = vmor %vm687, %vm688
        %v690 = vsel %vm689, %v682, %v686
        %v691 = vand.u32 2147483647, %v681
        %vm692 = vcmp.eq.f32.partialorder %v691, 8.507059e+37
        %v693 = vand.u32 %v681, 2147483648
        %v694 = vor.u32 1.1754944e-38, %v693
        %v695 = vsel %vm692, %v694, %v690
        %v696 = vmul.f32 %v671, %v695
        %v697 = vmin.f32 %v696, 1.0
        %v698 = vmax.f32 %v697, -1.0
        %v699 = vmul.f32 %v589, %v589
        %v700 = vmin.f32 16.0, %v699
        %v701 = vmul.f32 %v700, 2.1237322e-06
        %v702 = vadd.f32 %v701, 0.00028619796
        %v703 = vmul.f32 %v700, %v702
        %v704 = vadd.f32 %v703, 0.0036580483
        %v705 = vmul.f32 %v700, %v704
        %v706 = vadd.f32 %v705, 0.05243302
        %v707 = vmul.f32 %v700, %v706
        %v708 = vadd.f32 %v707, 0.18741608
        %v709 = vmul.f32 %v700, %v708
        %v710 = vadd.f32 %v709, 1.1283791
        %v711 = vmul.f32 %v589, %v710
        %v712 = vmul.f32 %v700, 3.8918573e-05
        %v713 = vadd.f32 %v712, 0.001143296
        %v714 = vmul.f32 %v700, %v713
        %v715 = vadd.f32 %v714, 0.014752088
        %v716 = vmul.f32 %v700, %v715
        %v717 = vadd.f32 %v716, 0.112945676
        %v718 = vmul.f32 %v700, %v717
        %v719 = vadd.f32 %v718, 0.4994258
        %v720 = vmul.f32 %v700, %v719
        %v721 = vadd.f32 %v720, 1.0
        %v722 = vrcp.pop %v721
        %v723 = vmul.f32 %v721, %v722
        %v724 = vsub.f32 1.0, %v723
        %v725 = vmul.f32 %v722, %v724
        %v726 = vadd.f32 %v722, %v725
        %vm727 = vweird.f32 %v721
        %vm728 = vweird.f32 %v722
        %vm729 = vmor %vm727, %vm728
        %v730 = vsel %vm729, %v722, %v726
        %v731 = vand.u32 2147483647, %v721
        %vm732 = vcmp.eq.f32.partialorder %v731, 8.507059e+37
        %v733 = vand.u32 %v721, 2147483648
        %v734 = vor.u32 1.1754944e-38, %v733
        %v735 = vsel %vm732, %v734, %v730
        %v736 = vmul.f32 %v711, %v735
        %v737 = vmin.f32 %v736, 1.0
        %v738 = vmax.f32 %v737, -1.0
        %v739 = vmul.f32 %v590, %v590
        %v740 = vmin.f32 16.0, %v739
        %v741 = vmul.f32 %v740, 2.1237322e-06
        %v742 = vadd.f32 %v741, 0.00028619796
        %v743 = vmul.f32 %v740, %v742
        %v744 = vadd.f32 %v743, 0.0036580483
        %v745 = vmul.f32 %v740, %v744
        %v746 = vadd.f32 %v745, 0.05243302
        %v747 = vmul.f32 %v740, %v746
        %v748 = vadd.f32 %v747, 0.18741608
        %v749 = vmul.f32 %v740, %v748
        %v750 = vadd.f32 %v749, 1.1283791
        %v751 = vmul.f32 %v590, %v750
        %v752 = vmul.f32 %v740, 3.8918573e-05
        %v753 = vadd.f32 %v752, 0.001143296
        %v754 = vmul.f32 %v740, %v753
        %v755 = vadd.f32 %v754, 0.014752088
        %v756 = vmul.f32 %v740, %v755
        %v757 = vadd.f32 %v756, 0.112945676
        %v758 = vmul.f32 %v740, %v757
        %v759 = vadd.f32 %v758, 0.4994258
        %v760 = vmul.f32 %v740, %v759
        %v761 = vadd.f32 %v760, 1.0
        %v762 = vrcp.pop %v761
        %v763 = vmul.f32 %v761, %v762
        %v764 = vsub.f32 1.0, %v763
        %v765 = vmul.f32 %v762, %v764
        %v766 = vadd.f32 %v762, %v765
        %vm767 = vweird.f32 %v761
        %vm768 = vweird.f32 %v762
        %vm769 = vmor %vm767, %vm768
        %v770 = vsel %vm769, %v762, %v766
        %v771 = vand.u32 2147483647, %v761
        %vm772 = vcmp.eq.f32.partialorder %v771, 8.507059e+37
        %v773 = vand.u32 %v761, 2147483648
        %v774 = vor.u32 1.1754944e-38, %v773
        %v775 = vsel %vm772, %v774, %v770
        %v776 = vmul.f32 %v751, %v775
        %v777 = vmin.f32 %v776, 1.0
        %v778 = vmax.f32 %v777, -1.0
        %v779 = vmul.f32 %v591, %v591
        %v780 = vmin.f32 16.0, %v779
        %v781 = vmul.f32 %v780, 2.1237322e-06
        %v782 = vadd.f32 %v781, 0.00028619796
        %v783 = vmul.f32 %v780, %v782
        %v784 = vadd.f32 %v783, 0.0036580483
        %v785 = vmul.f32 %v780, %v784
        %v786 = vadd.f32 %v785, 0.05243302
        %v787 = vmul.f32 %v780, %v786
        %v788 = vadd.f32 %v787, 0.18741608
        %v789 = vmul.f32 %v780, %v788
        %v790 = vadd.f32 %v789, 1.1283791
        %v791 = vmul.f32 %v591, %v790
        %v792 = vmul.f32 %v780, 3.8918573e-05
        %v793 = vadd.f32 %v792, 0.001143296
        %v794 = vmul.f32 %v780, %v793
        %v795 = vadd.f32 %v794, 0.014752088
        %v796 = vmul.f32 %v780, %v795
        %v797 = vadd.f32 %v796, 0.112945676
        %v798 = vmul.f32 %v780, %v797
        %v799 = vadd.f32 %v798, 0.4994258
        %v800 = vmul.f32 %v780, %v799
        %v801 = vadd.f32 %v800, 1.0
        %v802 = vrcp.pop %v801
        %v803 = vmul.f32 %v801, %v802
        %v804 = vsub.f32 1.0, %v803
        %v805 = vmul.f32 %v802, %v804
        %v806 = vadd.f32 %v802, %v805
        %vm807 = vweird.f32 %v801
        %vm808 = vweird.f32 %v802
        %vm809 = vmor %vm807, %vm808
        %v810 = vsel %vm809, %v802, %v806
        %v811 = vand.u32 2147483647, %v801
        %vm812 = vcmp.eq.f32.partialorder %v811, 8.507059e+37
        %v813 = vand.u32 %v801, 2147483648
        %v814 = vor.u32 1.1754944e-38, %v813
        %v815 = vsel %vm812, %v814, %v810
        %v816 = vmul.f32 %v791, %v815
        %v817 = vmin.f32 %v816, 1.0
        %v818 = vmax.f32 %v817, -1.0
        %v819 = vmul.f32 %v592, %v592
        %v820 = vmin.f32 16.0, %v819
        %v821 = vmul.f32 %v820, 2.1237322e-06
        %v822 = vadd.f32 %v821, 0.00028619796
        %v823 = vmul.f32 %v820, %v822
        %v824 = vadd.f32 %v823, 0.0036580483
        %v825 = vmul.f32 %v820, %v824
        %v826 = vadd.f32 %v825, 0.05243302
        %v827 = vmul.f32 %v820, %v826
        %v828 = vadd.f32 %v827, 0.18741608
        %v829 = vmul.f32 %v820, %v828
        %v830 = vadd.f32 %v829, 1.1283791
        %v831 = vmul.f32 %v592, %v830
        %v832 = vmul.f32 %v820, 3.8918573e-05
        %v833 = vadd.f32 %v832, 0.001143296
        %v834 = vmul.f32 %v820, %v833
        %v835 = vadd.f32 %v834, 0.014752088
        %v836 = vmul.f32 %v820, %v835
        %v837 = vadd.f32 %v836, 0.112945676
        %v838 = vmul.f32 %v820, %v837
        %v839 = vadd.f32 %v838, 0.4994258
        %v840 = vmul.f32 %v820, %v839
        %v841 = vadd.f32 %v840, 1.0
        %v842 = vrcp.pop %v841
        %v843 = vmul.f32 %v841, %v842
        %v844 = vsub.f32 1.0, %v843
        %v845 = vmul.f32 %v842, %v844
        %v846 = vadd.f32 %v842, %v845
        %vm847 = vweird.f32 %v841
        %vm848 = vweird.f32 %v842
        %vm849 = vmor %vm847, %vm848
        %v850 = vsel %vm849, %v842, %v846
        %v851 = vand.u32 2147483647, %v841
        %vm852 = vcmp.eq.f32.partialorder %v851, 8.507059e+37
        %v853 = vand.u32 %v841, 2147483648
        %v854 = vor.u32 1.1754944e-38, %v853
        %v855 = vsel %vm852, %v854, %v850
        %v856 = vmul.f32 %v831, %v855
        %v857 = vmin.f32 %v856, 1.0
        %v858 = vmax.f32 %v857, -1.0
        %v859 = vmul.f32 %v593, %v593
        %v860 = vmin.f32 16.0, %v859
        %v861 = vmul.f32 %v860, 2.1237322e-06
        %v862 = vadd.f32 %v861, 0.00028619796
        %v863 = vmul.f32 %v860, %v862
        %v864 = vadd.f32 %v863, 0.0036580483
        %v865 = vmul.f32 %v860, %v864
        %v866 = vadd.f32 %v865, 0.05243302
        %v867 = vmul.f32 %v860, %v866
        %v868 = vadd.f32 %v867, 0.18741608
        %v869 = vmul.f32 %v860, %v868
        %v870 = vadd.f32 %v869, 1.1283791
        %v871 = vmul.f32 %v593, %v870
        %v872 = vmul.f32 %v860, 3.8918573e-05
        %v873 = vadd.f32 %v872, 0.001143296
        %v874 = vmul.f32 %v860, %v873
        %v875 = vadd.f32 %v874, 0.014752088
        %v876 = vmul.f32 %v860, %v875
        %v877 = vadd.f32 %v876, 0.112945676
        %v878 = vmul.f32 %v860, %v877
        %v879 = vadd.f32 %v878, 0.4994258
        %v880 = vmul.f32 %v860, %v879
        %v881 = vadd.f32 %v880, 1.0
        %v882 = vrcp.pop %v881
        %v883 = vmul.f32 %v881, %v882
        %v884 = vsub.f32 1.0, %v883
        %v885 = vmul.f32 %v882, %v884
        %v886 = vadd.f32 %v882, %v885
        %vm887 = vweird.f32 %v881
        %vm888 = vweird.f32 %v882
        %vm889 = vmor %vm887, %vm888
        %v890 = vsel %vm889, %v882, %v886
        %v891 = vand.u32 2147483647, %v881
        %vm892 = vcmp.eq.f32.partialorder %v891, 8.507059e+37
        %v893 = vand.u32 %v881, 2147483648
        %v894 = vor.u32 1.1754944e-38, %v893
        %v895 = vsel %vm892, %v894, %v890
        %v896 = vmul.f32 %v871, %v895
        %v897 = vmin.f32 %v896, 1.0
        %v898 = vmax.f32 %v897, -1.0
        %v899 = vmul.f32 %v594, %v594
        %v900 = vmin.f32 16.0, %v899
        %v901 = vmul.f32 %v900, 2.1237322e-06
        %v902 = vadd.f32 %v901, 0.00028619796
        %v903 = vmul.f32 %v900, %v902
        %v904 = vadd.f32 %v903, 0.0036580483
        %v905 = vmul.f32 %v900, %v904
        %v906 = vadd.f32 %v905, 0.05243302
        %v907 = vmul.f32 %v900, %v906
        %v908 = vadd.f32 %v907, 0.18741608
        %v909 = vmul.f32 %v900, %v908
        %v910 = vadd.f32 %v909, 1.1283791
        %v911 = vmul.f32 %v594, %v910
        %v912 = vmul.f32 %v900, 3.8918573e-05
        %v913 = vadd.f32 %v912, 0.001143296
        %v914 = vmul.f32 %v900, %v913
        %v915 = vadd.f32 %v914, 0.014752088
        %v916 = vmul.f32 %v900, %v915
        %v917 = vadd.f32 %v916, 0.112945676
        %v918 = vmul.f32 %v900, %v917
        %v919 = vadd.f32 %v918, 0.4994258
        %v920 = vmul.f32 %v900, %v919
        %v921 = vadd.f32 %v920, 1.0
        %v922 = vrcp.pop %v921
        %v923 = vmul.f32 %v921, %v922
        %v924 = vsub.f32 1.0, %v923
        %v925 = vmul.f32 %v922, %v924
        %v926 = vadd.f32 %v922, %v925
        %vm927 = vweird.f32 %v921
        %vm928 = vweird.f32 %v922
        %vm929 = vmor %vm927, %vm928
        %v930 = vsel %vm929, %v922, %v926
        %v931 = vand.u32 2147483647, %v921
        %vm932 = vcmp.eq.f32.partialorder %v931, 8.507059e+37
        %v933 = vand.u32 %v921, 2147483648
        %v934 = vor.u32 1.1754944e-38, %v933
        %v935 = vsel %vm932, %v934, %v930
        %v936 = vmul.f32 %v911, %v935
        %v937 = vmin.f32 %v936, 1.0
        %v938 = vmax.f32 %v937, -1.0
        %v939 = vmul.f32 %v595, %v595
        %v940 = vmin.f32 16.0, %v939
        %v941 = vmul.f32 %v940, 2.1237322e-06
        %v942 = vadd.f32 %v941, 0.00028619796
        %v943 = vmul.f32 %v940, %v942
        %v944 = vadd.f32 %v943, 0.0036580483
        %v945 = vmul.f32 %v940, %v944
        %v946 = vadd.f32 %v945, 0.05243302
        %v947 = vmul.f32 %v940, %v946
        %v948 = vadd.f32 %v947, 0.18741608
        %v949 = vmul.f32 %v940, %v948
        %v950 = vadd.f32 %v949, 1.1283791
        %v951 = vmul.f32 %v595, %v950
        %v952 = vmul.f32 %v940, 3.8918573e-05
        %v953 = vadd.f32 %v952, 0.001143296
        %v954 = vmul.f32 %v940, %v953
        %v955 = vadd.f32 %v954, 0.014752088
        %v956 = vmul.f32 %v940, %v955
        %v957 = vadd.f32 %v956, 0.112945676
        %v958 = vmul.f32 %v940, %v957
        %v959 = vadd.f32 %v958, 0.4994258
        %v960 = vmul.f32 %v940, %v959
        %v961 = vadd.f32 %v960, 1.0
        %v962 = vrcp.pop %v961
        %v963 = vmul.f32 %v961, %v962
        %v964 = vsub.f32 1.0, %v963
        %v965 = vmul.f32 %v962, %v964
        %v966 = vadd.f32 %v962, %v965
        %vm967 = vweird.f32 %v961
        %vm968 = vweird.f32 %v962
        %vm969 = vmor %vm967, %vm968
        %v970 = vsel %vm969, %v962, %v966
        %v971 = vand.u32 2147483647, %v961
        %vm972 = vcmp.eq.f32.partialorder %v971, 8.507059e+37
        %v973 = vand.u32 %v961, 2147483648
        %v974 = vor.u32 1.1754944e-38, %v973
        %v975 = vsel %vm972, %v974, %v970
        %v976 = vmul.f32 %v951, %v975
        %v977 = vmin.f32 %v976, 1.0
        %v978 = vmax.f32 %v977, -1.0
        %v979 = vmul.f32 %v596, %v596
        %v980 = vmin.f32 16.0, %v979
        %v981 = vmul.f32 %v980, 2.1237322e-06
        %v982 = vadd.f32 %v981, 0.00028619796
        %v983 = vmul.f32 %v980, %v982
        %v984 = vadd.f32 %v983, 0.0036580483
        %v985 = vmul.f32 %v980, %v984
        %v986 = vadd.f32 %v985, 0.05243302
        %v987 = vmul.f32 %v980, %v986
        %v988 = vadd.f32 %v987, 0.18741608
        %v989 = vmul.f32 %v980, %v988
        %v990 = vadd.f32 %v989, 1.1283791
        %v991 = vmul.f32 %v596, %v990
        %v992 = vmul.f32 %v980, 3.8918573e-05
        %v993 = vadd.f32 %v992, 0.001143296
        %v994 = vmul.f32 %v980, %v993
        %v995 = vadd.f32 %v994, 0.014752088
        %v996 = vmul.f32 %v980, %v995
        %v997 = vadd.f32 %v996, 0.112945676
        %v998 = vmul.f32 %v980, %v997
        %v999 = vadd.f32 %v998, 0.4994258
        %v1000 = vmul.f32 %v980, %v999
        %v1001 = vadd.f32 %v1000, 1.0
        %v1002 = vrcp.pop %v1001
        %v1003 = vmul.f32 %v1001, %v1002
        %v1004 = vsub.f32 1.0, %v1003
        %v1005 = vmul.f32 %v1002, %v1004
        %v1006 = vadd.f32 %v1002, %v1005
        %vm1007 = vweird.f32 %v1001
        %vm1008 = vweird.f32 %v1002
        %vm1009 = vmor %vm1007, %vm1008
        %v1010 = vsel %vm1009, %v1002, %v1006
        %v1011 = vand.u32 2147483647, %v1001
        %vm1012 = vcmp.eq.f32.partialorder %v1011, 8.507059e+37
        %v1013 = vand.u32 %v1001, 2147483648
        %v1014 = vor.u32 1.1754944e-38, %v1013
        %v1015 = vsel %vm1012, %v1014, %v1010
        %v1016 = vmul.f32 %v991, %v1015
        %v1017 = vmin.f32 %v1016, 1.0
        %v1018 = vmax.f32 %v1017, -1.0
        %v1019 = vmul.f32 %v597, %v597
        %v1020 = vmin.f32 16.0, %v1019
        %v1021 = vmul.f32 %v1020, 2.1237322e-06
        %v1022 = vadd.f32 %v1021, 0.00028619796
        %v1023 = vmul.f32 %v1020, %v1022
        %v1024 = vadd.f32 %v1023, 0.0036580483
        %v1025 = vmul.f32 %v1020, %v1024
        %v1026 = vadd.f32 %v1025, 0.05243302
        %v1027 = vmul.f32 %v1020, %v1026
        %v1028 = vadd.f32 %v1027, 0.18741608
        %v1029 = vmul.f32 %v1020, %v1028
        %v1030 = vadd.f32 %v1029, 1.1283791
        %v1031 = vmul.f32 %v597, %v1030
        %v1032 = vmul.f32 %v1020, 3.8918573e-05
        %v1033 = vadd.f32 %v1032, 0.001143296
        %v1034 = vmul.f32 %v1020, %v1033
        %v1035 = vadd.f32 %v1034, 0.014752088
        %v1036 = vmul.f32 %v1020, %v1035
        %v1037 = vadd.f32 %v1036, 0.112945676
        %v1038 = vmul.f32 %v1020, %v1037
        %v1039 = vadd.f32 %v1038, 0.4994258
        %v1040 = vmul.f32 %v1020, %v1039
        %v1041 = vadd.f32 %v1040, 1.0
        %v1042 = vrcp.pop %v1041
        %v1043 = vmul.f32 %v1041, %v1042
        %v1044 = vsub.f32 1.0, %v1043
        %v1045 = vmul.f32 %v1042, %v1044
        %v1046 = vadd.f32 %v1042, %v1045
        %vm1047 = vweird.f32 %v1041
        %vm1048 = vweird.f32 %v1042
        %vm1049 = vmor %vm1047, %vm1048
        %v1050 = vsel %vm1049, %v1042, %v1046
        %v1051 = vand.u32 2147483647, %v1041
        %vm1052 = vcmp.eq.f32.partialorder %v1051, 8.507059e+37
        %v1053 = vand.u32 %v1041, 2147483648
        %v1054 = vor.u32 1.1754944e-38, %v1053
        %v1055 = vsel %vm1052, %v1054, %v1050
        %v1056 = vmul.f32 %v1031, %v1055
        %v1057 = vmin.f32 %v1056, 1.0
        %v1058 = vmax.f32 %v1057, -1.0
        %v1059 = vmul.f32 %v598, %v598
        %v1060 = vmin.f32 16.0, %v1059
        %v1061 = vmul.f32 %v1060, 2.1237322e-06
        %v1062 = vadd.f32 %v1061, 0.00028619796
        %v1063 = vmul.f32 %v1060, %v1062
        %v1064 = vadd.f32 %v1063, 0.0036580483
        %v1065 = vmul.f32 %v1060, %v1064
        %v1066 = vadd.f32 %v1065, 0.05243302
        %v1067 = vmul.f32 %v1060, %v1066
        %v1068 = vadd.f32 %v1067, 0.18741608
        %v1069 = vmul.f32 %v1060, %v1068
        %v1070 = vadd.f32 %v1069, 1.1283791
        %v1071 = vmul.f32 %v598, %v1070
        %v1072 = vmul.f32 %v1060, 3.8918573e-05
        %v1073 = vadd.f32 %v1072, 0.001143296
        %v1074 = vmul.f32 %v1060, %v1073
        %v1075 = vadd.f32 %v1074, 0.014752088
        %v1076 = vmul.f32 %v1060, %v1075
        %v1077 = vadd.f32 %v1076, 0.112945676
        %v1078 = vmul.f32 %v1060, %v1077
        %v1079 = vadd.f32 %v1078, 0.4994258
        %v1080 = vmul.f32 %v1060, %v1079
        %v1081 = vadd.f32 %v1080, 1.0
        %v1082 = vrcp.pop %v1081
        %v1083 = vmul.f32 %v1081, %v1082
        %v1084 = vsub.f32 1.0, %v1083
        %v1085 = vmul.f32 %v1082, %v1084
        %v1086 = vadd.f32 %v1082, %v1085
        %vm1087 = vweird.f32 %v1081
        %vm1088 = vweird.f32 %v1082
        %vm1089 = vmor %vm1087, %vm1088
        %v1090 = vsel %vm1089, %v1082, %v1086
        %v1091 = vand.u32 2147483647, %v1081
        %vm1092 = vcmp.eq.f32.partialorder %v1091, 8.507059e+37
        %v1093 = vand.u32 %v1081, 2147483648
        %v1094 = vor.u32 1.1754944e-38, %v1093
        %v1095 = vsel %vm1092, %v1094, %v1090
        %v1096 = vmul.f32 %v1071, %v1095
        %v1097 = vmin.f32 %v1096, 1.0
        %v1098 = vmax.f32 %v1097, -1.0
        %v1099 = vmul.f32 %v599, %v599
        %v1100 = vmin.f32 16.0, %v1099
        %v1101 = vmul.f32 %v1100, 2.1237322e-06
        %v1102 = vadd.f32 %v1101, 0.00028619796
        %v1103 = vmul.f32 %v1100, %v1102
        %v1104 = vadd.f32 %v1103, 0.0036580483
        %v1105 = vmul.f32 %v1100, %v1104
        %v1106 = vadd.f32 %v1105, 0.05243302
        %v1107 = vmul.f32 %v1100, %v1106
        %v1108 = vadd.f32 %v1107, 0.18741608
        %v1109 = vmul.f32 %v1100, %v1108
        %v1110 = vadd.f32 %v1109, 1.1283791
        %v1111 = vmul.f32 %v599, %v1110
        %v1112 = vmul.f32 %v1100, 3.8918573e-05
        %v1113 = vadd.f32 %v1112, 0.001143296
        %v1114 = vmul.f32 %v1100, %v1113
        %v1115 = vadd.f32 %v1114, 0.014752088
        %v1116 = vmul.f32 %v1100, %v1115
        %v1117 = vadd.f32 %v1116, 0.112945676
        %v1118 = vmul.f32 %v1100, %v1117
        %v1119 = vadd.f32 %v1118, 0.4994258
        %v1120 = vmul.f32 %v1100, %v1119
        %v1121 = vadd.f32 %v1120, 1.0
        %v1122 = vrcp.pop %v1121
        %v1123 = vmul.f32 %v1121, %v1122
        %v1124 = vsub.f32 1.0, %v1123
        %v1125 = vmul.f32 %v1122, %v1124
        %v1126 = vadd.f32 %v1122, %v1125
        %vm1127 = vweird.f32 %v1121
        %vm1128 = vweird.f32 %v1122
        %vm1129 = vmor %vm1127, %vm1128
        %v1130 = vsel %vm1129, %v1122, %v1126
        %v1131 = vand.u32 2147483647, %v1121
        %vm1132 = vcmp.eq.f32.partialorder %v1131, 8.507059e+37
        %v1133 = vand.u32 %v1121, 2147483648
        %v1134 = vor.u32 1.1754944e-38, %v1133
        %v1135 = vsel %vm1132, %v1134, %v1130
        %v1136 = vmul.f32 %v1111, %v1135
        %v1137 = vmin.f32 %v1136, 1.0
        %v1138 = vmax.f32 %v1137, -1.0
        %v1139 = vmul.f32 %v600, %v600
        %v1140 = vmin.f32 16.0, %v1139
        %v1141 = vmul.f32 %v1140, 2.1237322e-06
        %v1142 = vadd.f32 %v1141, 0.00028619796
        %v1143 = vmul.f32 %v1140, %v1142
        %v1144 = vadd.f32 %v1143, 0.0036580483
        %v1145 = vmul.f32 %v1140, %v1144
        %v1146 = vadd.f32 %v1145, 0.05243302
        %v1147 = vmul.f32 %v1140, %v1146
        %v1148 = vadd.f32 %v1147, 0.18741608
        %v1149 = vmul.f32 %v1140, %v1148
        %v1150 = vadd.f32 %v1149, 1.1283791
        %v1151 = vmul.f32 %v600, %v1150
        %v1152 = vmul.f32 %v1140, 3.8918573e-05
        %v1153 = vadd.f32 %v1152, 0.001143296
        %v1154 = vmul.f32 %v1140, %v1153
        %v1155 = vadd.f32 %v1154, 0.014752088
        %v1156 = vmul.f32 %v1140, %v1155
        %v1157 = vadd.f32 %v1156, 0.112945676
        %v1158 = vmul.f32 %v1140, %v1157
        %v1159 = vadd.f32 %v1158, 0.4994258
        %v1160 = vmul.f32 %v1140, %v1159
        %v1161 = vadd.f32 %v1160, 1.0
        %v1162 = vrcp.pop %v1161
        %v1163 = vmul.f32 %v1161, %v1162
        %v1164 = vsub.f32 1.0, %v1163
        %v1165 = vmul.f32 %v1162, %v1164
        %v1166 = vadd.f32 %v1162, %v1165
        %vm1167 = vweird.f32 %v1161
        %vm1168 = vweird.f32 %v1162
        %vm1169 = vmor %vm1167, %vm1168
        %v1170 = vsel %vm1169, %v1162, %v1166
        %v1171 = vand.u32 2147483647, %v1161
        %vm1172 = vcmp.eq.f32.partialorder %v1171, 8.507059e+37
        %v1173 = vand.u32 %v1161, 2147483648
        %v1174 = vor.u32 1.1754944e-38, %v1173
        %v1175 = vsel %vm1172, %v1174, %v1170
        %v1176 = vmul.f32 %v1151, %v1175
        %v1177 = vmin.f32 %v1176, 1.0
        %v1178 = vmax.f32 %v1177, -1.0
        %v1179 = vmul.f32 %v601, %v601
        %v1180 = vmin.f32 16.0, %v1179
        %v1181 = vmul.f32 %v1180, 2.1237322e-06
        %v1182 = vadd.f32 %v1181, 0.00028619796
        %v1183 = vmul.f32 %v1180, %v1182
        %v1184 = vadd.f32 %v1183, 0.0036580483
        %v1185 = vmul.f32 %v1180, %v1184
        %v1186 = vadd.f32 %v1185, 0.05243302
        %v1187 = vmul.f32 %v1180, %v1186
        %v1188 = vadd.f32 %v1187, 0.18741608
        %v1189 = vmul.f32 %v1180, %v1188
        %v1190 = vadd.f32 %v1189, 1.1283791
        %v1191 = vmul.f32 %v601, %v1190
        %v1192 = vmul.f32 %v1180, 3.8918573e-05
        %v1193 = vadd.f32 %v1192, 0.001143296
        %v1194 = vmul.f32 %v1180, %v1193
        %v1195 = vadd.f32 %v1194, 0.014752088
        %v1196 = vmul.f32 %v1180, %v1195
        %v1197 = vadd.f32 %v1196, 0.112945676
        %v1198 = vmul.f32 %v1180, %v1197
        %v1199 = vadd.f32 %v1198, 0.4994258
        %v1200 = vmul.f32 %v1180, %v1199
        %v1201 = vadd.f32 %v1200, 1.0
        %v1202 = vrcp.pop %v1201
        %v1203 = vmul.f32 %v1201, %v1202
        %v1204 = vsub.f32 1.0, %v1203
        %v1205 = vmul.f32 %v1202, %v1204
        %v1206 = vadd.f32 %v1202, %v1205
        %vm1207 = vweird.f32 %v1201
        %vm1208 = vweird.f32 %v1202
        %vm1209 = vmor %vm1207, %vm1208
        %v1210 = vsel %vm1209, %v1202, %v1206
        %v1211 = vand.u32 2147483647, %v1201
        %vm1212 = vcmp.eq.f32.partialorder %v1211, 8.507059e+37
        %v1213 = vand.u32 %v1201, 2147483648
        %v1214 = vor.u32 1.1754944e-38, %v1213
        %v1215 = vsel %vm1212, %v1214, %v1210
        %v1216 = vmul.f32 %v1191, %v1215
        %v1217 = vmin.f32 %v1216, 1.0
        %v1218 = vmax.f32 %v1217, -1.0
        %v1219 = vmul.f32 %v602, %v602
        %v1220 = vmin.f32 16.0, %v1219
        %v1221 = vmul.f32 %v1220, 2.1237322e-06
        %v1222 = vadd.f32 %v1221, 0.00028619796
        %v1223 = vmul.f32 %v1220, %v1222
        %v1224 = vadd.f32 %v1223, 0.0036580483
        %v1225 = vmul.f32 %v1220, %v1224
        %v1226 = vadd.f32 %v1225, 0.05243302
        %v1227 = vmul.f32 %v1220, %v1226
        %v1228 = vadd.f32 %v1227, 0.18741608
        %v1229 = vmul.f32 %v1220, %v1228
        %v1230 = vadd.f32 %v1229, 1.1283791
        %v1231 = vmul.f32 %v602, %v1230
        %v1232 = vmul.f32 %v1220, 3.8918573e-05
        %v1233 = vadd.f32 %v1232, 0.001143296
        %v1234 = vmul.f32 %v1220, %v1233
        %v1235 = vadd.f32 %v1234, 0.014752088
        %v1236 = vmul.f32 %v1220, %v1235
        %v1237 = vadd.f32 %v1236, 0.112945676
        %v1238 = vmul.f32 %v1220, %v1237
        %v1239 = vadd.f32 %v1238, 0.4994258
        %v1240 = vmul.f32 %v1220, %v1239
        %v1241 = vadd.f32 %v1240, 1.0
        %v1242 = vrcp.pop %v1241
        %v1243 = vmul.f32 %v1241, %v1242
        %v1244 = vsub.f32 1.0, %v1243
        %v1245 = vmul.f32 %v1242, %v1244
        %v1246 = vadd.f32 %v1242, %v1245
        %vm1247 = vweird.f32 %v1241
        %vm1248 = vweird.f32 %v1242
        %vm1249 = vmor %vm1247, %vm1248
        %v1250 = vsel %vm1249, %v1242, %v1246
        %v1251 = vand.u32 2147483647, %v1241
        %vm1252 = vcmp.eq.f32.partialorder %v1251, 8.507059e+37
        %v1253 = vand.u32 %v1241, 2147483648
        %v1254 = vor.u32 1.1754944e-38, %v1253
        %v1255 = vsel %vm1252, %v1254, %v1250
        %v1256 = vmul.f32 %v1231, %v1255
        %v1257 = vmin.f32 %v1256, 1.0
        %v1258 = vmax.f32 %v1257, -1.0
        %v1259 = vmul.f32 %v603, %v603
        %v1260 = vmin.f32 16.0, %v1259
        %v1261 = vmul.f32 %v1260, 2.1237322e-06
        %v1262 = vadd.f32 %v1261, 0.00028619796
        %v1263 = vmul.f32 %v1260, %v1262
        %v1264 = vadd.f32 %v1263, 0.0036580483
        %v1265 = vmul.f32 %v1260, %v1264
        %v1266 = vadd.f32 %v1265, 0.05243302
        %v1267 = vmul.f32 %v1260, %v1266
        %v1268 = vadd.f32 %v1267, 0.18741608
        %v1269 = vmul.f32 %v1260, %v1268
        %v1270 = vadd.f32 %v1269, 1.1283791
        %v1271 = vmul.f32 %v603, %v1270
        %v1272 = vmul.f32 %v1260, 3.8918573e-05
        %v1273 = vadd.f32 %v1272, 0.001143296
        %v1274 = vmul.f32 %v1260, %v1273
        %v1275 = vadd.f32 %v1274, 0.014752088
        %v1276 = vmul.f32 %v1260, %v1275
        %v1277 = vadd.f32 %v1276, 0.112945676
        %v1278 = vmul.f32 %v1260, %v1277
        %v1279 = vadd.f32 %v1278, 0.4994258
        %v1280 = vmul.f32 %v1260, %v1279
        %v1281 = vadd.f32 %v1280, 1.0
        %v1282 = vrcp.pop %v1281
        %v1283 = vmul.f32 %v1281, %v1282
        %v1284 = vsub.f32 1.0, %v1283
        %v1285 = vmul.f32 %v1282, %v1284
        %v1286 = vadd.f32 %v1282, %v1285
        %vm1287 = vweird.f32 %v1281
        %vm1288 = vweird.f32 %v1282
        %vm1289 = vmor %vm1287, %vm1288
        %v1290 = vsel %vm1289, %v1282, %v1286
        %v1291 = vand.u32 2147483647, %v1281
        %vm1292 = vcmp.eq.f32.partialorder %v1291, 8.507059e+37
        %v1293 = vand.u32 %v1281, 2147483648
        %v1294 = vor.u32 1.1754944e-38, %v1293
        %v1295 = vsel %vm1292, %v1294, %v1290
        %v1296 = vmul.f32 %v1271, %v1295
        %v1297 = vmin.f32 %v1296, 1.0
        %v1298 = vmax.f32 %v1297, -1.0
        %v1299 = vmul.f32 %v604, %v604
        %v1300 = vmin.f32 16.0, %v1299
        %v1301 = vmul.f32 %v1300, 2.1237322e-06
        %v1302 = vadd.f32 %v1301, 0.00028619796
        %v1303 = vmul.f32 %v1300, %v1302
        %v1304 = vadd.f32 %v1303, 0.0036580483
        %v1305 = vmul.f32 %v1300, %v1304
        %v1306 = vadd.f32 %v1305, 0.05243302
        %v1307 = vmul.f32 %v1300, %v1306
        %v1308 = vadd.f32 %v1307, 0.18741608
        %v1309 = vmul.f32 %v1300, %v1308
        %v1310 = vadd.f32 %v1309, 1.1283791
        %v1311 = vmul.f32 %v604, %v1310
        %v1312 = vmul.f32 %v1300, 3.8918573e-05
        %v1313 = vadd.f32 %v1312, 0.001143296
        %v1314 = vmul.f32 %v1300, %v1313
        %v1315 = vadd.f32 %v1314, 0.014752088
        %v1316 = vmul.f32 %v1300, %v1315
        %v1317 = vadd.f32 %v1316, 0.112945676
        %v1318 = vmul.f32 %v1300, %v1317
        %v1319 = vadd.f32 %v1318, 0.4994258
        %v1320 = vmul.f32 %v1300, %v1319
        %v1321 = vadd.f32 %v1320, 1.0
        %v1322 = vrcp.pop %v1321
        %v1323 = vmul.f32 %v1321, %v1322
        %v1324 = vsub.f32 1.0, %v1323
        %v1325 = vmul.f32 %v1322, %v1324
        %v1326 = vadd.f32 %v1322, %v1325
        %vm1327 = vweird.f32 %v1321
        %vm1328 = vweird.f32 %v1322
        %vm1329 = vmor %vm1327, %vm1328
        %v1330 = vsel %vm1329, %v1322, %v1326
        %v1331 = vand.u32 2147483647, %v1321
        %vm1332 = vcmp.eq.f32.partialorder %v1331, 8.507059e+37
        %v1333 = vand.u32 %v1321, 2147483648
        %v1334 = vor.u32 1.1754944e-38, %v1333
        %v1335 = vsel %vm1332, %v1334, %v1330
        %v1336 = vmul.f32 %v1311, %v1335
        %v1337 = vmin.f32 %v1336, 1.0
        %v1338 = vmax.f32 %v1337, -1.0
        %v1339 = vmul.f32 %v605, %v605
        %v1340 = vmin.f32 16.0, %v1339
        %v1341 = vmul.f32 %v1340, 2.1237322e-06
        %v1342 = vadd.f32 %v1341, 0.00028619796
        %v1343 = vmul.f32 %v1340, %v1342
        %v1344 = vadd.f32 %v1343, 0.0036580483
        %v1345 = vmul.f32 %v1340, %v1344
        %v1346 = vadd.f32 %v1345, 0.05243302
        %v1347 = vmul.f32 %v1340, %v1346
        %v1348 = vadd.f32 %v1347, 0.18741608
        %v1349 = vmul.f32 %v1340, %v1348
        %v1350 = vadd.f32 %v1349, 1.1283791
        %v1351 = vmul.f32 %v605, %v1350
        %v1352 = vmul.f32 %v1340, 3.8918573e-05
        %v1353 = vadd.f32 %v1352, 0.001143296
        %v1354 = vmul.f32 %v1340, %v1353
        %v1355 = vadd.f32 %v1354, 0.014752088
        %v1356 = vmul.f32 %v1340, %v1355
        %v1357 = vadd.f32 %v1356, 0.112945676
        %v1358 = vmul.f32 %v1340, %v1357
        %v1359 = vadd.f32 %v1358, 0.4994258
        %v1360 = vmul.f32 %v1340, %v1359
        %v1361 = vadd.f32 %v1360, 1.0
        %v1362 = vrcp.pop %v1361
        %v1363 = vmul.f32 %v1361, %v1362
        %v1364 = vsub.f32 1.0, %v1363
        %v1365 = vmul.f32 %v1362, %v1364
        %v1366 = vadd.f32 %v1362, %v1365
        %vm1367 = vweird.f32 %v1361
        %vm1368 = vweird.f32 %v1362
        %vm1369 = vmor %vm1367, %vm1368
        %v1370 = vsel %vm1369, %v1362, %v1366
        %v1371 = vand.u32 2147483647, %v1361
        %vm1372 = vcmp.eq.f32.partialorder %v1371, 8.507059e+37
        %v1373 = vand.u32 %v1361, 2147483648
        %v1374 = vor.u32 1.1754944e-38, %v1373
        %v1375 = vsel %vm1372, %v1374, %v1370
        %v1376 = vmul.f32 %v1351, %v1375
        %v1377 = vmin.f32 %v1376, 1.0
        %v1378 = vmax.f32 %v1377, -1.0
        %v1379 = vmul.f32 %v606, %v606
        %v1380 = vmin.f32 16.0, %v1379
        %v1381 = vmul.f32 %v1380, 2.1237322e-06
        %v1382 = vadd.f32 %v1381, 0.00028619796
        %v1383 = vmul.f32 %v1380, %v1382
        %v1384 = vadd.f32 %v1383, 0.0036580483
        %v1385 = vmul.f32 %v1380, %v1384
        %v1386 = vadd.f32 %v1385, 0.05243302
        %v1387 = vmul.f32 %v1380, %v1386
        %v1388 = vadd.f32 %v1387, 0.18741608
        %v1389 = vmul.f32 %v1380, %v1388
        %v1390 = vadd.f32 %v1389, 1.1283791
        %v1391 = vmul.f32 %v606, %v1390
        %v1392 = vmul.f32 %v1380, 3.8918573e-05
        %v1393 = vadd.f32 %v1392, 0.001143296
        %v1394 = vmul.f32 %v1380, %v1393
        %v1395 = vadd.f32 %v1394, 0.014752088
        %v1396 = vmul.f32 %v1380, %v1395
        %v1397 = vadd.f32 %v1396, 0.112945676
        %v1398 = vmul.f32 %v1380, %v1397
        %v1399 = vadd.f32 %v1398, 0.4994258
        %v1400 = vmul.f32 %v1380, %v1399
        %v1401 = vadd.f32 %v1400, 1.0
        %v1402 = vrcp.pop %v1401
        %v1403 = vmul.f32 %v1401, %v1402
        %v1404 = vsub.f32 1.0, %v1403
        %v1405 = vmul.f32 %v1402, %v1404
        %v1406 = vadd.f32 %v1402, %v1405
        %vm1407 = vweird.f32 %v1401
        %vm1408 = vweird.f32 %v1402
        %vm1409 = vmor %vm1407, %vm1408
        %v1410 = vsel %vm1409, %v1402, %v1406
        %v1411 = vand.u32 2147483647, %v1401
        %vm1412 = vcmp.eq.f32.partialorder %v1411, 8.507059e+37
        %v1413 = vand.u32 %v1401, 2147483648
        %v1414 = vor.u32 1.1754944e-38, %v1413
        %v1415 = vsel %vm1412, %v1414, %v1410
        %v1416 = vmul.f32 %v1391, %v1415
        %v1417 = vmin.f32 %v1416, 1.0
        %v1418 = vmax.f32 %v1417, -1.0
        %v1419 = vmul.f32 %v607, %v607
        %v1420 = vmin.f32 16.0, %v1419
        %v1421 = vmul.f32 %v1420, 2.1237322e-06
        %v1422 = vadd.f32 %v1421, 0.00028619796
        %v1423 = vmul.f32 %v1420, %v1422
        %v1424 = vadd.f32 %v1423, 0.0036580483
        %v1425 = vmul.f32 %v1420, %v1424
        %v1426 = vadd.f32 %v1425, 0.05243302
        %v1427 = vmul.f32 %v1420, %v1426
        %v1428 = vadd.f32 %v1427, 0.18741608
        %v1429 = vmul.f32 %v1420, %v1428
        %v1430 = vadd.f32 %v1429, 1.1283791
        %v1431 = vmul.f32 %v607, %v1430
        %v1432 = vmul.f32 %v1420, 3.8918573e-05
        %v1433 = vadd.f32 %v1432, 0.001143296
        %v1434 = vmul.f32 %v1420, %v1433
        %v1435 = vadd.f32 %v1434, 0.014752088
        %v1436 = vmul.f32 %v1420, %v1435
        %v1437 = vadd.f32 %v1436, 0.112945676
        %v1438 = vmul.f32 %v1420, %v1437
        %v1439 = vadd.f32 %v1438, 0.4994258
        %v1440 = vmul.f32 %v1420, %v1439
        %v1441 = vadd.f32 %v1440, 1.0
        %v1442 = vrcp.pop %v1441
        %v1443 = vmul.f32 %v1441, %v1442
        %v1444 = vsub.f32 1.0, %v1443
        %v1445 = vmul.f32 %v1442, %v1444
        %v1446 = vadd.f32 %v1442, %v1445
        %vm1447 = vweird.f32 %v1441
        %vm1448 = vweird.f32 %v1442
        %vm1449 = vmor %vm1447, %vm1448
        %v1450 = vsel %vm1449, %v1442, %v1446
        %v1451 = vand.u32 2147483647, %v1441
        %vm1452 = vcmp.eq.f32.partialorder %v1451, 8.507059e+37
        %v1453 = vand.u32 %v1441, 2147483648
        %v1454 = vor.u32 1.1754944e-38, %v1453
        %v1455 = vsel %vm1452, %v1454, %v1450
        %v1456 = vmul.f32 %v1431, %v1455
        %v1457 = vmin.f32 %v1456, 1.0
        %v1458 = vmax.f32 %v1457, -1.0
        %v1459 = vmul.f32 %v608, %v608
        %v1460 = vmin.f32 16.0, %v1459
        %v1461 = vmul.f32 %v1460, 2.1237322e-06
        %v1462 = vadd.f32 %v1461, 0.00028619796
        %v1463 = vmul.f32 %v1460, %v1462
        %v1464 = vadd.f32 %v1463, 0.0036580483
        %v1465 = vmul.f32 %v1460, %v1464
        %v1466 = vadd.f32 %v1465, 0.05243302
        %v1467 = vmul.f32 %v1460, %v1466
        %v1468 = vadd.f32 %v1467, 0.18741608
        %v1469 = vmul.f32 %v1460, %v1468
        %v1470 = vadd.f32 %v1469, 1.1283791
        %v1471 = vmul.f32 %v608, %v1470
        %v1472 = vmul.f32 %v1460, 3.8918573e-05
        %v1473 = vadd.f32 %v1472, 0.001143296
        %v1474 = vmul.f32 %v1460, %v1473
        %v1475 = vadd.f32 %v1474, 0.014752088
        %v1476 = vmul.f32 %v1460, %v1475
        %v1477 = vadd.f32 %v1476, 0.112945676
        %v1478 = vmul.f32 %v1460, %v1477
        %v1479 = vadd.f32 %v1478, 0.4994258
        %v1480 = vmul.f32 %v1460, %v1479
        %v1481 = vadd.f32 %v1480, 1.0
        %v1482 = vrcp.pop %v1481
        %v1483 = vmul.f32 %v1481, %v1482
        %v1484 = vsub.f32 1.0, %v1483
        %v1485 = vmul.f32 %v1482, %v1484
        %v1486 = vadd.f32 %v1482, %v1485
        %vm1487 = vweird.f32 %v1481
        %vm1488 = vweird.f32 %v1482
        %vm1489 = vmor %vm1487, %vm1488
        %v1490 = vsel %vm1489, %v1482, %v1486
        %v1491 = vand.u32 2147483647, %v1481
        %vm1492 = vcmp.eq.f32.partialorder %v1491, 8.507059e+37
        %v1493 = vand.u32 %v1481, 2147483648
        %v1494 = vor.u32 1.1754944e-38, %v1493
        %v1495 = vsel %vm1492, %v1494, %v1490
        %v1496 = vmul.f32 %v1471, %v1495
        %v1497 = vmin.f32 %v1496, 1.0
        %v1498 = vmax.f32 %v1497, -1.0
        %v1499 = vmul.f32 %v609, %v609
        %v1500 = vmin.f32 16.0, %v1499
        %v1501 = vmul.f32 %v1500, 2.1237322e-06
        %v1502 = vadd.f32 %v1501, 0.00028619796
        %v1503 = vmul.f32 %v1500, %v1502
        %v1504 = vadd.f32 %v1503, 0.0036580483
        %v1505 = vmul.f32 %v1500, %v1504
        %v1506 = vadd.f32 %v1505, 0.05243302
        %v1507 = vmul.f32 %v1500, %v1506
        %v1508 = vadd.f32 %v1507, 0.18741608
        %v1509 = vmul.f32 %v1500, %v1508
        %v1510 = vadd.f32 %v1509, 1.1283791
        %v1511 = vmul.f32 %v609, %v1510
        %v1512 = vmul.f32 %v1500, 3.8918573e-05
        %v1513 = vadd.f32 %v1512, 0.001143296
        %v1514 = vmul.f32 %v1500, %v1513
        %v1515 = vadd.f32 %v1514, 0.014752088
        %v1516 = vmul.f32 %v1500, %v1515
        %v1517 = vadd.f32 %v1516, 0.112945676
        %v1518 = vmul.f32 %v1500, %v1517
        %v1519 = vadd.f32 %v1518, 0.4994258
        %v1520 = vmul.f32 %v1500, %v1519
        %v1521 = vadd.f32 %v1520, 1.0
        %v1522 = vrcp.pop %v1521
        %v1523 = vmul.f32 %v1521, %v1522
        %v1524 = vsub.f32 1.0, %v1523
        %v1525 = vmul.f32 %v1522, %v1524
        %v1526 = vadd.f32 %v1522, %v1525
        %vm1527 = vweird.f32 %v1521
        %vm1528 = vweird.f32 %v1522
        %vm1529 = vmor %vm1527, %vm1528
        %v1530 = vsel %vm1529, %v1522, %v1526
        %v1531 = vand.u32 2147483647, %v1521
        %vm1532 = vcmp.eq.f32.partialorder %v1531, 8.507059e+37
        %v1533 = vand.u32 %v1521, 2147483648
        %v1534 = vor.u32 1.1754944e-38, %v1533
        %v1535 = vsel %vm1532, %v1534, %v1530
        %v1536 = vmul.f32 %v1511, %v1535
        %v1537 = vmin.f32 %v1536, 1.0
        %v1538 = vmax.f32 %v1537, -1.0
        %v1539 = vmul.f32 %v610, %v610
        %v1540 = vmin.f32 16.0, %v1539
        %v1541 = vmul.f32 %v1540, 2.1237322e-06
        %v1542 = vadd.f32 %v1541, 0.00028619796
        %v1543 = vmul.f32 %v1540, %v1542
        %v1544 = vadd.f32 %v1543, 0.0036580483
        %v1545 = vmul.f32 %v1540, %v1544
        %v1546 = vadd.f32 %v1545, 0.05243302
        %v1547 = vmul.f32 %v1540, %v1546
        %v1548 = vadd.f32 %v1547, 0.18741608
        %v1549 = vmul.f32 %v1540, %v1548
        %v1550 = vadd.f32 %v1549, 1.1283791
        %v1551 = vmul.f32 %v610, %v1550
        %v1552 = vmul.f32 %v1540, 3.8918573e-05
        %v1553 = vadd.f32 %v1552, 0.001143296
        %v1554 = vmul.f32 %v1540, %v1553
        %v1555 = vadd.f32 %v1554, 0.014752088
        %v1556 = vmul.f32 %v1540, %v1555
        %v1557 = vadd.f32 %v1556, 0.112945676
        %v1558 = vmul.f32 %v1540, %v1557
        %v1559 = vadd.f32 %v1558, 0.4994258
        %v1560 = vmul.f32 %v1540, %v1559
        %v1561 = vadd.f32 %v1560, 1.0
        %v1562 = vrcp.pop %v1561
        %v1563 = vmul.f32 %v1561, %v1562
        %v1564 = vsub.f32 1.0, %v1563
        %v1565 = vmul.f32 %v1562, %v1564
        %v1566 = vadd.f32 %v1562, %v1565
        %vm1567 = vweird.f32 %v1561
        %vm1568 = vweird.f32 %v1562
        %vm1569 = vmor %vm1567, %vm1568
        %v1570 = vsel %vm1569, %v1562, %v1566
        %v1571 = vand.u32 2147483647, %v1561
        %vm1572 = vcmp.eq.f32.partialorder %v1571, 8.507059e+37
        %v1573 = vand.u32 %v1561, 2147483648
        %v1574 = vor.u32 1.1754944e-38, %v1573
        %v1575 = vsel %vm1572, %v1574, %v1570
        %v1576 = vmul.f32 %v1551, %v1575
        %v1577 = vmin.f32 %v1576, 1.0
        %v1578 = vmax.f32 %v1577, -1.0
        %v1579 = vmul.f32 %v611, %v611
        %v1580 = vmin.f32 16.0, %v1579
        %v1581 = vmul.f32 %v1580, 2.1237322e-06
        %v1582 = vadd.f32 %v1581, 0.00028619796
        %v1583 = vmul.f32 %v1580, %v1582
        %v1584 = vadd.f32 %v1583, 0.0036580483
        %v1585 = vmul.f32 %v1580, %v1584
        %v1586 = vadd.f32 %v1585, 0.05243302
        %v1587 = vmul.f32 %v1580, %v1586
        %v1588 = vadd.f32 %v1587, 0.18741608
        %v1589 = vmul.f32 %v1580, %v1588
        %v1590 = vadd.f32 %v1589, 1.1283791
        %v1591 = vmul.f32 %v611, %v1590
        %v1592 = vmul.f32 %v1580, 3.8918573e-05
        %v1593 = vadd.f32 %v1592, 0.001143296
        %v1594 = vmul.f32 %v1580, %v1593
        %v1595 = vadd.f32 %v1594, 0.014752088
        %v1596 = vmul.f32 %v1580, %v1595
        %v1597 = vadd.f32 %v1596, 0.112945676
        %v1598 = vmul.f32 %v1580, %v1597
        %v1599 = vadd.f32 %v1598, 0.4994258
        %v1600 = vmul.f32 %v1580, %v1599
        %v1601 = vadd.f32 %v1600, 1.0
        %v1602 = vrcp.pop %v1601
        %v1603 = vmul.f32 %v1601, %v1602
        %v1604 = vsub.f32 1.0, %v1603
        %v1605 = vmul.f32 %v1602, %v1604
        %v1606 = vadd.f32 %v1602, %v1605
        %vm1607 = vweird.f32 %v1601
        %vm1608 = vweird.f32 %v1602
        %vm1609 = vmor %vm1607, %vm1608
        %v1610 = vsel %vm1609, %v1602, %v1606
        %v1611 = vand.u32 2147483647, %v1601
        %vm1612 = vcmp.eq.f32.partialorder %v1611, 8.507059e+37
        %v1613 = vand.u32 %v1601, 2147483648
        %v1614 = vor.u32 1.1754944e-38, %v1613
        %v1615 = vsel %vm1612, %v1614, %v1610
        %v1616 = vmul.f32 %v1591, %v1615
        %v1617 = vmin.f32 %v1616, 1.0
        %v1618 = vmax.f32 %v1617, -1.0
        %v1619 = vmul.f32 %v612, %v612
        %v1620 = vmin.f32 16.0, %v1619
        %v1621 = vmul.f32 %v1620, 2.1237322e-06
        %v1622 = vadd.f32 %v1621, 0.00028619796
        %v1623 = vmul.f32 %v1620, %v1622
        %v1624 = vadd.f32 %v1623, 0.0036580483
        %v1625 = vmul.f32 %v1620, %v1624
        %v1626 = vadd.f32 %v1625, 0.05243302
        %v1627 = vmul.f32 %v1620, %v1626
        %v1628 = vadd.f32 %v1627, 0.18741608
        %v1629 = vmul.f32 %v1620, %v1628
        %v1630 = vadd.f32 %v1629, 1.1283791
        %v1631 = vmul.f32 %v612, %v1630
        %v1632 = vmul.f32 %v1620, 3.8918573e-05
        %v1633 = vadd.f32 %v1632, 0.001143296
        %v1634 = vmul.f32 %v1620, %v1633
        %v1635 = vadd.f32 %v1634, 0.014752088
        %v1636 = vmul.f32 %v1620, %v1635
        %v1637 = vadd.f32 %v1636, 0.112945676
        %v1638 = vmul.f32 %v1620, %v1637
        %v1639 = vadd.f32 %v1638, 0.4994258
        %v1640 = vmul.f32 %v1620, %v1639
        %v1641 = vadd.f32 %v1640, 1.0
        %v1642 = vrcp.pop %v1641
        %v1643 = vmul.f32 %v1641, %v1642
        %v1644 = vsub.f32 1.0, %v1643
        %v1645 = vmul.f32 %v1642, %v1644
        %v1646 = vadd.f32 %v1642, %v1645
        %vm1647 = vweird.f32 %v1641
        %vm1648 = vweird.f32 %v1642
        %vm1649 = vmor %vm1647, %vm1648
        %v1650 = vsel %vm1649, %v1642, %v1646
        %v1651 = vand.u32 2147483647, %v1641
        %vm1652 = vcmp.eq.f32.partialorder %v1651, 8.507059e+37
        %v1653 = vand.u32 %v1641, 2147483648
        %v1654 = vor.u32 1.1754944e-38, %v1653
        %v1655 = vsel %vm1652, %v1654, %v1650
        %v1656 = vmul.f32 %v1631, %v1655
        %v1657 = vmin.f32 %v1656, 1.0
        %v1658 = vmax.f32 %v1657, -1.0
        %v1659 = vmul.f32 %v613, %v613
        %v1660 = vmin.f32 16.0, %v1659
        %v1661 = vmul.f32 %v1660, 2.1237322e-06
        %v1662 = vadd.f32 %v1661, 0.00028619796
        %v1663 = vmul.f32 %v1660, %v1662
        %v1664 = vadd.f32 %v1663, 0.0036580483
        %v1665 = vmul.f32 %v1660, %v1664
        %v1666 = vadd.f32 %v1665, 0.05243302
        %v1667 = vmul.f32 %v1660, %v1666
        %v1668 = vadd.f32 %v1667, 0.18741608
        %v1669 = vmul.f32 %v1660, %v1668
        %v1670 = vadd.f32 %v1669, 1.1283791
        %v1671 = vmul.f32 %v613, %v1670
        %v1672 = vmul.f32 %v1660, 3.8918573e-05
        %v1673 = vadd.f32 %v1672, 0.001143296
        %v1674 = vmul.f32 %v1660, %v1673
        %v1675 = vadd.f32 %v1674, 0.014752088
        %v1676 = vmul.f32 %v1660, %v1675
        %v1677 = vadd.f32 %v1676, 0.112945676
        %v1678 = vmul.f32 %v1660, %v1677
        %v1679 = vadd.f32 %v1678, 0.4994258
        %v1680 = vmul.f32 %v1660, %v1679
        %v1681 = vadd.f32 %v1680, 1.0
        %v1682 = vrcp.pop %v1681
        %v1683 = vmul.f32 %v1681, %v1682
        %v1684 = vsub.f32 1.0, %v1683
        %v1685 = vmul.f32 %v1682, %v1684
        %v1686 = vadd.f32 %v1682, %v1685
        %vm1687 = vweird.f32 %v1681
        %vm1688 = vweird.f32 %v1682
        %vm1689 = vmor %vm1687, %vm1688
        %v1690 = vsel %vm1689, %v1682, %v1686
        %v1691 = vand.u32 2147483647, %v1681
        %vm1692 = vcmp.eq.f32.partialorder %v1691, 8.507059e+37
        %v1693 = vand.u32 %v1681, 2147483648
        %v1694 = vor.u32 1.1754944e-38, %v1693
        %v1695 = vsel %vm1692, %v1694, %v1690
        %v1696 = vmul.f32 %v1671, %v1695
        %v1697 = vmin.f32 %v1696, 1.0
        %v1698 = vmax.f32 %v1697, -1.0
        %v1699 = vmul.f32 %v614, %v614
        %v1700 = vmin.f32 16.0, %v1699
        %v1701 = vmul.f32 %v1700, 2.1237322e-06
        %v1702 = vadd.f32 %v1701, 0.00028619796
        %v1703 = vmul.f32 %v1700, %v1702
        %v1704 = vadd.f32 %v1703, 0.0036580483
        %v1705 = vmul.f32 %v1700, %v1704
        %v1706 = vadd.f32 %v1705, 0.05243302
        %v1707 = vmul.f32 %v1700, %v1706
        %v1708 = vadd.f32 %v1707, 0.18741608
        %v1709 = vmul.f32 %v1700, %v1708
        %v1710 = vadd.f32 %v1709, 1.1283791
        %v1711 = vmul.f32 %v614, %v1710
        %v1712 = vmul.f32 %v1700, 3.8918573e-05
        %v1713 = vadd.f32 %v1712, 0.001143296
        %v1714 = vmul.f32 %v1700, %v1713
        %v1715 = vadd.f32 %v1714, 0.014752088
        %v1716 = vmul.f32 %v1700, %v1715
        %v1717 = vadd.f32 %v1716, 0.112945676
        %v1718 = vmul.f32 %v1700, %v1717
        %v1719 = vadd.f32 %v1718, 0.4994258
        %v1720 = vmul.f32 %v1700, %v1719
        %v1721 = vadd.f32 %v1720, 1.0
        %v1722 = vrcp.pop %v1721
        %v1723 = vmul.f32 %v1721, %v1722
        %v1724 = vsub.f32 1.0, %v1723
        %v1725 = vmul.f32 %v1722, %v1724
        %v1726 = vadd.f32 %v1722, %v1725
        %vm1727 = vweird.f32 %v1721
        %vm1728 = vweird.f32 %v1722
        %vm1729 = vmor %vm1727, %vm1728
        %v1730 = vsel %vm1729, %v1722, %v1726
        %v1731 = vand.u32 2147483647, %v1721
        %vm1732 = vcmp.eq.f32.partialorder %v1731, 8.507059e+37
        %v1733 = vand.u32 %v1721, 2147483648
        %v1734 = vor.u32 1.1754944e-38, %v1733
        %v1735 = vsel %vm1732, %v1734, %v1730
        %v1736 = vmul.f32 %v1711, %v1735
        %v1737 = vmin.f32 %v1736, 1.0
        %v1738 = vmax.f32 %v1737, -1.0
        %v1739 = vmul.f32 %v615, %v615
        %v1740 = vmin.f32 16.0, %v1739
        %v1741 = vmul.f32 %v1740, 2.1237322e-06
        %v1742 = vadd.f32 %v1741, 0.00028619796
        %v1743 = vmul.f32 %v1740, %v1742
        %v1744 = vadd.f32 %v1743, 0.0036580483
        %v1745 = vmul.f32 %v1740, %v1744
        %v1746 = vadd.f32 %v1745, 0.05243302
        %v1747 = vmul.f32 %v1740, %v1746
        %v1748 = vadd.f32 %v1747, 0.18741608
        %v1749 = vmul.f32 %v1740, %v1748
        %v1750 = vadd.f32 %v1749, 1.1283791
        %v1751 = vmul.f32 %v615, %v1750
        %v1752 = vmul.f32 %v1740, 3.8918573e-05
        %v1753 = vadd.f32 %v1752, 0.001143296
        %v1754 = vmul.f32 %v1740, %v1753
        %v1755 = vadd.f32 %v1754, 0.014752088
        %v1756 = vmul.f32 %v1740, %v1755
        %v1757 = vadd.f32 %v1756, 0.112945676
        %v1758 = vmul.f32 %v1740, %v1757
        %v1759 = vadd.f32 %v1758, 0.4994258
        %v1760 = vmul.f32 %v1740, %v1759
        %v1761 = vadd.f32 %v1760, 1.0
        %v1762 = vrcp.pop %v1761
        %v1763 = vmul.f32 %v1761, %v1762
        %v1764 = vsub.f32 1.0, %v1763
        %v1765 = vmul.f32 %v1762, %v1764
        %v1766 = vadd.f32 %v1762, %v1765
        %vm1767 = vweird.f32 %v1761
        %vm1768 = vweird.f32 %v1762
        %vm1769 = vmor %vm1767, %vm1768
        %v1770 = vsel %vm1769, %v1762, %v1766
        %v1771 = vand.u32 2147483647, %v1761
        %vm1772 = vcmp.eq.f32.partialorder %v1771, 8.507059e+37
        %v1773 = vand.u32 %v1761, 2147483648
        %v1774 = vor.u32 1.1754944e-38, %v1773
        %v1775 = vsel %vm1772, %v1774, %v1770
        %v1776 = vmul.f32 %v1751, %v1775
        %v1777 = vmin.f32 %v1776, 1.0
        %v1778 = vmax.f32 %v1777, -1.0
        %v1779 = vmul.f32 %v616, %v616
        %v1780 = vmin.f32 16.0, %v1779
        %v1781 = vmul.f32 %v1780, 2.1237322e-06
        %v1782 = vadd.f32 %v1781, 0.00028619796
        %v1783 = vmul.f32 %v1780, %v1782
        %v1784 = vadd.f32 %v1783, 0.0036580483
        %v1785 = vmul.f32 %v1780, %v1784
        %v1786 = vadd.f32 %v1785, 0.05243302
        %v1787 = vmul.f32 %v1780, %v1786
        %v1788 = vadd.f32 %v1787, 0.18741608
        %v1789 = vmul.f32 %v1780, %v1788
        %v1790 = vadd.f32 %v1789, 1.1283791
        %v1791 = vmul.f32 %v616, %v1790
        %v1792 = vmul.f32 %v1780, 3.8918573e-05
        %v1793 = vadd.f32 %v1792, 0.001143296
        %v1794 = vmul.f32 %v1780, %v1793
        %v1795 = vadd.f32 %v1794, 0.014752088
        %v1796 = vmul.f32 %v1780, %v1795
        %v1797 = vadd.f32 %v1796, 0.112945676
        %v1798 = vmul.f32 %v1780, %v1797
        %v1799 = vadd.f32 %v1798, 0.4994258
        %v1800 = vmul.f32 %v1780, %v1799
        %v1801 = vadd.f32 %v1800, 1.0
        %v1802 = vrcp.pop %v1801
        %v1803 = vmul.f32 %v1801, %v1802
        %v1804 = vsub.f32 1.0, %v1803
        %v1805 = vmul.f32 %v1802, %v1804
        %v1806 = vadd.f32 %v1802, %v1805
        %vm1807 = vweird.f32 %v1801
        %vm1808 = vweird.f32 %v1802
        %vm1809 = vmor %vm1807, %vm1808
        %v1810 = vsel %vm1809, %v1802, %v1806
        %v1811 = vand.u32 2147483647, %v1801
        %vm1812 = vcmp.eq.f32.partialorder %v1811, 8.507059e+37
        %v1813 = vand.u32 %v1801, 2147483648
        %v1814 = vor.u32 1.1754944e-38, %v1813
        %v1815 = vsel %vm1812, %v1814, %v1810
        %v1816 = vmul.f32 %v1791, %v1815
        %v1817 = vmin.f32 %v1816, 1.0
        %v1818 = vmax.f32 %v1817, -1.0
        %v1819 = vmul.f32 %v617, %v617
        %v1820 = vmin.f32 16.0, %v1819
        %v1821 = vmul.f32 %v1820, 2.1237322e-06
        %v1822 = vadd.f32 %v1821, 0.00028619796
        %v1823 = vmul.f32 %v1820, %v1822
        %v1824 = vadd.f32 %v1823, 0.0036580483
        %v1825 = vmul.f32 %v1820, %v1824
        %v1826 = vadd.f32 %v1825, 0.05243302
        %v1827 = vmul.f32 %v1820, %v1826
        %v1828 = vadd.f32 %v1827, 0.18741608
        %v1829 = vmul.f32 %v1820, %v1828
        %v1830 = vadd.f32 %v1829, 1.1283791
        %v1831 = vmul.f32 %v617, %v1830
        %v1832 = vmul.f32 %v1820, 3.8918573e-05
        %v1833 = vadd.f32 %v1832, 0.001143296
        %v1834 = vmul.f32 %v1820, %v1833
        %v1835 = vadd.f32 %v1834, 0.014752088
        %v1836 = vmul.f32 %v1820, %v1835
        %v1837 = vadd.f32 %v1836, 0.112945676
        %v1838 = vmul.f32 %v1820, %v1837
        %v1839 = vadd.f32 %v1838, 0.4994258
        %v1840 = vmul.f32 %v1820, %v1839
        %v1841 = vadd.f32 %v1840, 1.0
        %v1842 = vrcp.pop %v1841
        %v1843 = vmul.f32 %v1841, %v1842
        %v1844 = vsub.f32 1.0, %v1843
        %v1845 = vmul.f32 %v1842, %v1844
        %v1846 = vadd.f32 %v1842, %v1845
        %vm1847 = vweird.f32 %v1841
        %vm1848 = vweird.f32 %v1842
        %vm1849 = vmor %vm1847, %vm1848
        %v1850 = vsel %vm1849, %v1842, %v1846
        %v1851 = vand.u32 2147483647, %v1841
        %vm1852 = vcmp.eq.f32.partialorder %v1851, 8.507059e+37
        %v1853 = vand.u32 %v1841, 2147483648
        %v1854 = vor.u32 1.1754944e-38, %v1853
        %v1855 = vsel %vm1852, %v1854, %v1850
        %v1856 = vmul.f32 %v1831, %v1855
        %v1857 = vmin.f32 %v1856, 1.0
        %v1858 = vmax.f32 %v1857, -1.0
        %v1859 = vmul.f32 %v618, %v618
        %v1860 = vmin.f32 16.0, %v1859
        %v1861 = vmul.f32 %v1860, 2.1237322e-06
        %v1862 = vadd.f32 %v1861, 0.00028619796
        %v1863 = vmul.f32 %v1860, %v1862
        %v1864 = vadd.f32 %v1863, 0.0036580483
        %v1865 = vmul.f32 %v1860, %v1864
        %v1866 = vadd.f32 %v1865, 0.05243302
        %v1867 = vmul.f32 %v1860, %v1866
        %v1868 = vadd.f32 %v1867, 0.18741608
        %v1869 = vmul.f32 %v1860, %v1868
        %v1870 = vadd.f32 %v1869, 1.1283791
        %v1871 = vmul.f32 %v618, %v1870
        %v1872 = vmul.f32 %v1860, 3.8918573e-05
        %v1873 = vadd.f32 %v1872, 0.001143296
        %v1874 = vmul.f32 %v1860, %v1873
        %v1875 = vadd.f32 %v1874, 0.014752088
        %v1876 = vmul.f32 %v1860, %v1875
        %v1877 = vadd.f32 %v1876, 0.112945676
        %v1878 = vmul.f32 %v1860, %v1877
        %v1879 = vadd.f32 %v1878, 0.4994258
        %v1880 = vmul.f32 %v1860, %v1879
        %v1881 = vadd.f32 %v1880, 1.0
        %v1882 = vrcp.pop %v1881
        %v1883 = vmul.f32 %v1881, %v1882
        %v1884 = vsub.f32 1.0, %v1883
        %v1885 = vmul.f32 %v1882, %v1884
        %v1886 = vadd.f32 %v1882, %v1885
        %vm1887 = vweird.f32 %v1881
        %vm1888 = vweird.f32 %v1882
        %vm1889 = vmor %vm1887, %vm1888
        %v1890 = vsel %vm1889, %v1882, %v1886
        %v1891 = vand.u32 2147483647, %v1881
        %vm1892 = vcmp.eq.f32.partialorder %v1891, 8.507059e+37
        %v1893 = vand.u32 %v1881, 2147483648
        %v1894 = vor.u32 1.1754944e-38, %v1893
        %v1895 = vsel %vm1892, %v1894, %v1890
        %v1896 = vmul.f32 %v1871, %v1895
        %v1897 = vmin.f32 %v1896, 1.0
        %v1898 = vmax.f32 %v1897, -1.0
        %v1899 = vadd.f32 %v658, 1.0
        %v1900 = vadd.f32 %v698, 1.0
        %v1901 = vadd.f32 %v738, 1.0
        %v1902 = vadd.f32 %v778, 1.0
        %v1903 = vadd.f32 %v818, 1.0
        %v1904 = vadd.f32 %v858, 1.0
        %v1905 = vadd.f32 %v898, 1.0
        %v1906 = vadd.f32 %v938, 1.0
        %v1907 = vadd.f32 %v978, 1.0
        %v1908 = vadd.f32 %v1018, 1.0
        %v1909 = vadd.f32 %v1058, 1.0
        %v1910 = vadd.f32 %v1098, 1.0
        %v1911 = vadd.f32 %v1138, 1.0
        %v1912 = vadd.f32 %v1178, 1.0
        %v1913 = vadd.f32 %v1218, 1.0
        %v1914 = vadd.f32 %v1258, 1.0
        %v1915 = vadd.f32 %v1298, 1.0
        %v1916 = vadd.f32 %v1338, 1.0
        %v1917 = vadd.f32 %v1378, 1.0
        %v1918 = vadd.f32 %v1418, 1.0
        %v1919 = vadd.f32 %v1458, 1.0
        %v1920 = vadd.f32 %v1498, 1.0
        %v1921 = vadd.f32 %v1538, 1.0
        %v1922 = vadd.f32 %v1578, 1.0
        %v1923 = vadd.f32 %v1618, 1.0
        %v1924 = vadd.f32 %v1658, 1.0
        %v1925 = vadd.f32 %v1698, 1.0
        %v1926 = vadd.f32 %v1738, 1.0
        %v1927 = vadd.f32 %v1778, 1.0
        %v1928 = vadd.f32 %v1818, 1.0
        %v1929 = vadd.f32 %v1858, 1.0
        %v1930 = vadd.f32 %v1898, 1.0
        %v1931 = vmul.f32 %v555, %v1899
        %v1932 = vmul.f32 %v556, %v1900
        %v1933 = vmul.f32 %v557, %v1901
        %v1934 = vmul.f32 %v558, %v1902
        %v1935 = vmul.f32 %v559, %v1903
        %v1936 = vmul.f32 %v560, %v1904
        %v1937 = vmul.f32 %v561, %v1905
        %v1938 = vmul.f32 %v562, %v1906
        %v1939 = vmul.f32 %v563, %v1907
        %v1940 = vmul.f32 %v564, %v1908
        %v1941 = vmul.f32 %v565, %v1909
        %v1942 = vmul.f32 %v566, %v1910
        %v1943 = vmul.f32 %v567, %v1911
        %v1944 = vmul.f32 %v568, %v1912
        %v1945 = vmul.f32 %v569, %v1913
        %v1946 = vmul.f32 %v570, %v1914
        %v1947 = vmul.f32 %v571, %v1915
        %v1948 = vmul.f32 %v572, %v1916
        %v1949 = vmul.f32 %v573, %v1917
        %v1950 = vmul.f32 %v574, %v1918
        %v1951 = vmul.f32 %v575, %v1919
        %v1952 = vmul.f32 %v576, %v1920
        %v1953 = vmul.f32 %v577, %v1921
        %v1954 = vmul.f32 %v578, %v1922
        %v1955 = vmul.f32 %v579, %v1923
        %v1956 = vmul.f32 %v580, %v1924
        %v1957 = vmul.f32 %v581, %v1925
        %v1958 = vmul.f32 %v582, %v1926
        %v1959 = vmul.f32 %v583, %v1927
        %v1960 = vmul.f32 %v584, %v1928
        %v1961 = vmul.f32 %v585, %v1929
        %v1962 = vmul.f32 %v586, %v1930
        %v1963 = vld [vmem:[#allocation2] sm:$0xff]
        %v1964 = vld [vmem:[#allocation2 + $0x8] sm:$0xff]
        %v1965 = vld [vmem:[#allocation2 + $0x10] sm:$0xff]
        %v1966 = vld [vmem:[#allocation2 + $0x18] sm:$0xff]
        %v1967 = vld [vmem:[#allocation2 + $0x20] sm:$0xff]
        %v1968 = vld [vmem:[#allocation2 + $0x28] sm:$0xff]
        %v1969 = vld [vmem:[#allocation2 + $0x30] sm:$0xff]
        %v1970 = vld [vmem:[#allocation2 + $0x38] sm:$0xff]
        %v1971 = vld [vmem:[#allocation2 + $0x40] sm:$0xff]
        %v1972 = vld [vmem:[#allocation2 + $0x48] sm:$0xff]
        %v1973 = vld [vmem:[#allocation2 + $0x50] sm:$0xff]
        %v1974 = vld [vmem:[#allocation2 + $0x58] sm:$0xff]
        %v1975 = vld [vmem:[#allocation2 + $0x60] sm:$0xff]
        %v1976 = vld [vmem:[#allocation2 + $0x68] sm:$0xff]
        %v1977 = vld [vmem:[#allocation2 + $0x70] sm:$0xff]
        %v1978 = vld [vmem:[#allocation2 + $0x78] sm:$0xff]
        %v1979 = vld [vmem:[#allocation2 + $0x80] sm:$0xff]
        %v1980 = vld [vmem:[#allocation2 + $0x88] sm:$0xff]
        %v1981 = vld [vmem:[#allocation2 + $0x90] sm:$0xff]
        %v1982 = vld [vmem:[#allocation2 + $0x98] sm:$0xff]
        %v1983 = vld [vmem:[#allocation2 + $0xa0] sm:$0xff]
        %v1984 = vld [vmem:[#allocation2 + $0xa8] sm:$0xff]
        %v1985 = vld [vmem:[#allocation2 + $0xb0] sm:$0xff]
        %v1986 = vld [vmem:[#allocation2 + $0xb8] sm:$0xff]
        %v1987 = vld [vmem:[#allocation2 + $0xc0] sm:$0xff]
        %v1988 = vld [vmem:[#allocation2 + $0xc8] sm:$0xff]
        %v1989 = vld [vmem:[#allocation2 + $0xd0] sm:$0xff]
        %v1990 = vld [vmem:[#allocation2 + $0xd8] sm:$0xff]
        %v1991 = vld [vmem:[#allocation2 + $0xe0] sm:$0xff]
        %v1992 = vld [vmem:[#allocation2 + $0xe8] sm:$0xff]
        %v1993 = vld [vmem:[#allocation2 + $0xf0] sm:$0xff]
        %v1994 = vld [vmem:[#allocation2 + $0xf8] sm:$0xff]
        %v1995 = vld [vmem:[%s307] sm:$0xff]
        %v1996 = vld [vmem:[%s307 + $0x8] sm:$0xff]
        %v1997 = vld [vmem:[%s307 + $0x10] sm:$0xff]
        %v1998 = vld [vmem:[%s307 + $0x18] sm:$0xff]
        %v1999 = vld [vmem:[%s307 + $0x20] sm:$0xff]
        %v2000 = vld [vmem:[%s307 + $0x28] sm:$0xff]
        %v2001 = vld [vmem:[%s307 + $0x30] sm:$0xff]
        %v2002 = vld [vmem:[%s307 + $0x38] sm:$0xff]
        %v2003 = vld [vmem:[%s307 + $0x40] sm:$0xff]
        %v2004 = vld [vmem:[%s307 + $0x48] sm:$0xff]
        %v2005 = vld [vmem:[%s307 + $0x50] sm:$0xff]
        %v2006 = vld [vmem:[%s307 + $0x58] sm:$0xff]
        %v2007 = vld [vmem:[%s307 + $0x60] sm:$0xff]
        %v2008 = vld [vmem:[%s307 + $0x68] sm:$0xff]
        %v2009 = vld [vmem:[%s307 + $0x70] sm:$0xff]
        %v2010 = vld [vmem:[%s307 + $0x78] sm:$0xff]
        %2011 = vmatpush.msra.mxu0 %v2010
        %2012 = vmatpush.msra.mxu0 %v2009
        %2013 = vmatpush.msra.mxu0 %v2008
        %2014 = vmatpush.msra.mxu0 %v2007
        %2015 = vmatpush.msra.mxu0 %v2006
        %2016 = vmatpush.msra.mxu0 %v2005
        %2017 = vmatpush.msra.mxu0 %v2004
        %2018 = vmatpush.msra.mxu0 %v2003
        %2019 = vmatpush.msra.mxu0 %v2002
        %2020 = vmatpush.msra.mxu0 %v2001
        %2021 = vmatpush.msra.mxu0 %v2000
        %2022 = vmatpush.msra.mxu0 %v1999
        %2023 = vmatpush.msra.mxu0 %v1998
        %2024 = vmatpush.msra.mxu0 %v1997
        %2025 = vmatpush.msra.mxu0 %v1996
        %2026 = vmatpush.msra.mxu0 %v1995
        %2027 = vmatmul.f32.gmra.mxu0 %v1931
        %v2028 = vpop.f32.mrf.mxu0
        %v2029 = vadd.f32 0.0, %v2028
        %2030 = vmatmul.f32.gmra.mxu0 %v1932
        %v2031 = vpop.f32.mrf.mxu0
        %v2032 = vadd.f32 0.0, %v2031
        %2033 = vmatmul.f32.gmra.mxu0 %v1933
        %v2034 = vpop.f32.mrf.mxu0
        %v2035 = vadd.f32 0.0, %v2034
        %2036 = vmatmul.f32.gmra.mxu0 %v1934
        %v2037 = vpop.f32.mrf.mxu0
        %v2038 = vadd.f32 0.0, %v2037
        %2039 = vmatmul.f32.gmra.mxu0 %v1935
        %v2040 = vpop.f32.mrf.mxu0
        %v2041 = vadd.f32 0.0, %v2040
        %2042 = vmatmul.f32.gmra.mxu0 %v1936
        %v2043 = vpop.f32.mrf.mxu0
        %v2044 = vadd.f32 0.0, %v2043
        %2045 = vmatmul.f32.gmra.mxu0 %v1937
        %v2046 = vpop.f32.mrf.mxu0
        %v2047 = vadd.f32 0.0, %v2046
        %2048 = vmatmul.f32.gmra.mxu0 %v1938
        %v2049 = vpop.f32.mrf.mxu0
        %v2050 = vadd.f32 0.0, %v2049
        %2051 = vmatmul.f32.gmra.mxu0 %v1939
        %v2052 = vpop.f32.mrf.mxu0
        %v2053 = vadd.f32 0.0, %v2052
        %2054 = vmatmul.f32.gmra.mxu0 %v1940
        %v2055 = vpop.f32.mrf.mxu0
        %v2056 = vadd.f32 0.0, %v2055
        %2057 = vmatmul.f32.gmra.mxu0 %v1941
        %v2058 = vpop.f32.mrf.mxu0
        %v2059 = vadd.f32 0.0, %v2058
        %2060 = vmatmul.f32.gmra.mxu0 %v1942
        %v2061 = vpop.f32.mrf.mxu0
        %v2062 = vadd.f32 0.0, %v2061
        %2063 = vmatmul.f32.gmra.mxu0 %v1943
        %v2064 = vpop.f32.mrf.mxu0
        %v2065 = vadd.f32 0.0, %v2064
        %2066 = vmatmul.f32.gmra.mxu0 %v1944
        %v2067 = vpop.f32.mrf.mxu0
        %v2068 = vadd.f32 0.0, %v2067
        %2069 = vmatmul.f32.gmra.mxu0 %v1945
        %v2070 = vpop.f32.mrf.mxu0
        %v2071 = vadd.f32 0.0, %v2070
        %2072 = vmatmul.f32.gmra.mxu0 %v1946
        %v2073 = vpop.f32.mrf.mxu0
        %v2074 = vadd.f32 0.0, %v2073
        %2075 = vmatmul.f32.gmra.mxu0 %v1947
        %v2076 = vpop.f32.mrf.mxu0
        %v2077 = vadd.f32 0.0, %v2076
        %2078 = vmatmul.f32.gmra.mxu0 %v1948
        %v2079 = vpop.f32.mrf.mxu0
        %v2080 = vadd.f32 0.0, %v2079
        %2081 = vmatmul.f32.gmra.mxu0 %v1949
        %v2082 = vpop.f32.mrf.mxu0
        %v2083 = vadd.f32 0.0, %v2082
        %2084 = vmatmul.f32.gmra.mxu0 %v1950
        %v2085 = vpop.f32.mrf.mxu0
        %v2086 = vadd.f32 0.0, %v2085
        %2087 = vmatmul.f32.gmra.mxu0 %v1951
        %v2088 = vpop.f32.mrf.mxu0
        %v2089 = vadd.f32 0.0, %v2088
        %2090 = vmatmul.f32.gmra.mxu0 %v1952
        %v2091 = vpop.f32.mrf.mxu0
        %v2092 = vadd.f32 0.0, %v2091
        %2093 = vmatmul.f32.gmra.mxu0 %v1953
        %v2094 = vpop.f32.mrf.mxu0
        %v2095 = vadd.f32 0.0, %v2094
        %2096 = vmatmul.f32.gmra.mxu0 %v1954
        %v2097 = vpop.f32.mrf.mxu0
        %v2098 = vadd.f32 0.0, %v2097
        %2099 = vmatmul.f32.gmra.mxu0 %v1955
        %v2100 = vpop.f32.mrf.mxu0
        %v2101 = vadd.f32 0.0, %v2100
        %2102 = vmatmul.f32.gmra.mxu0 %v1956
        %v2103 = vpop.f32.mrf.mxu0
        %v2104 = vadd.f32 0.0, %v2103
        %2105 = vmatmul.f32.gmra.mxu0 %v1957
        %v2106 = vpop.f32.mrf.mxu0
        %v2107 = vadd.f32 0.0, %v2106
        %2108 = vmatmul.f32.gmra.mxu0 %v1958
        %v2109 = vpop.f32.mrf.mxu0
        %v2110 = vadd.f32 0.0, %v2109
        %2111 = vmatmul.f32.gmra.mxu0 %v1959
        %v2112 = vpop.f32.mrf.mxu0
        %v2113 = vadd.f32 0.0, %v2112
        %2114 = vmatmul.f32.gmra.mxu0 %v1960
        %v2115 = vpop.f32.mrf.mxu0
        %v2116 = vadd.f32 0.0, %v2115
        %2117 = vmatmul.f32.gmra.mxu0 %v1961
        %v2118 = vpop.f32.mrf.mxu0
        %v2119 = vadd.f32 0.0, %v2118
        %2120 = vmatmul.f32.gmra.mxu0 %v1962
        %v2121 = vpop.f32.mrf.mxu0
        %v2122 = vadd.f32 0.0, %v2121
        %2123 = vdwg.mxu0
        %v2124 = vadd.f32 %v1963, %v2029
        %v2125 = vadd.f32 %v1964, %v2032
        %v2126 = vadd.f32 %v1965, %v2035
        %v2127 = vadd.f32 %v1966, %v2038
        %v2128 = vadd.f32 %v1967, %v2041
        %v2129 = vadd.f32 %v1968, %v2044
        %v2130 = vadd.f32 %v1969, %v2047
        %v2131 = vadd.f32 %v1970, %v2050
        %v2132 = vadd.f32 %v1971, %v2053
        %v2133 = vadd.f32 %v1972, %v2056
        %v2134 = vadd.f32 %v1973, %v2059
        %v2135 = vadd.f32 %v1974, %v2062
        %v2136 = vadd.f32 %v1975, %v2065
        %v2137 = vadd.f32 %v1976, %v2068
        %v2138 = vadd.f32 %v1977, %v2071
        %v2139 = vadd.f32 %v1978, %v2074
        %v2140 = vadd.f32 %v1979, %v2077
        %v2141 = vadd.f32 %v1980, %v2080
        %v2142 = vadd.f32 %v1981, %v2083
        %v2143 = vadd.f32 %v1982, %v2086
        %v2144 = vadd.f32 %v1983, %v2089
        %v2145 = vadd.f32 %v1984, %v2092
        %v2146 = vadd.f32 %v1985, %v2095
        %v2147 = vadd.f32 %v1986, %v2098
        %v2148 = vadd.f32 %v1987, %v2101
        %v2149 = vadd.f32 %v1988, %v2104
        %v2150 = vadd.f32 %v1989, %v2107
        %v2151 = vadd.f32 %v1990, %v2110
        %v2152 = vadd.f32 %v1991, %v2113
        %v2153 = vadd.f32 %v1992, %v2116
        %v2154 = vadd.f32 %v1993, %v2119
        %v2155 = vadd.f32 %v1994, %v2122
        %2156 = vst [vmem:[#allocation2] sm:$0xff] %v2124
        %2157 = vst [vmem:[#allocation2 + $0x8] sm:$0xff] %v2125
        %2158 = vst [vmem:[#allocation2 + $0x10] sm:$0xff] %v2126
        %2159 = vst [vmem:[#allocation2 + $0x18] sm:$0xff] %v2127
        %2160 = vst [vmem:[#allocation2 + $0x20] sm:$0xff] %v2128
        %2161 = vst [vmem:[#allocation2 + $0x28] sm:$0xff] %v2129
        %2162 = vst [vmem:[#allocation2 + $0x30] sm:$0xff] %v2130
        %2163 = vst [vmem:[#allocation2 + $0x38] sm:$0xff] %v2131
        %2164 = vst [vmem:[#allocation2 + $0x40] sm:$0xff] %v2132
        %2165 = vst [vmem:[#allocation2 + $0x48] sm:$0xff] %v2133
        %2166 = vst [vmem:[#allocation2 + $0x50] sm:$0xff] %v2134
        %2167 = vst [vmem:[#allocation2 + $0x58] sm:$0xff] %v2135
        %2168 = vst [vmem:[#allocation2 + $0x60] sm:$0xff] %v2136
        %2169 = vst [vmem:[#allocation2 + $0x68] sm:$0xff] %v2137
        %2170 = vst [vmem:[#allocation2 + $0x70] sm:$0xff] %v2138
        %2171 = vst [vmem:[#allocation2 + $0x78] sm:$0xff] %v2139
        %2172 = vst [vmem:[#allocation2 + $0x80] sm:$0xff] %v2140
        %2173 = vst [vmem:[#allocation2 + $0x88] sm:$0xff] %v2141
        %2174 = vst [vmem:[#allocation2 + $0x90] sm:$0xff] %v2142
        %2175 = vst [vmem:[#allocation2 + $0x98] sm:$0xff] %v2143
        %2176 = vst [vmem:[#allocation2 + $0xa0] sm:$0xff] %v2144
        %2177 = vst [vmem:[#allocation2 + $0xa8] sm:$0xff] %v2145
        %2178 = vst [vmem:[#allocation2 + $0xb0] sm:$0xff] %v2146
        %2179 = vst [vmem:[#allocation2 + $0xb8] sm:$0xff] %v2147
        %2180 = vst [vmem:[#allocation2 + $0xc0] sm:$0xff] %v2148
        %2181 = vst [vmem:[#allocation2 + $0xc8] sm:$0xff] %v2149
        %2182 = vst [vmem:[#allocation2 + $0xd0] sm:$0xff] %v2150
        %2183 = vst [vmem:[#allocation2 + $0xd8] sm:$0xff] %v2151
        %2184 = vst [vmem:[#allocation2 + $0xe0] sm:$0xff] %v2152
        %2185 = vst [vmem:[#allocation2 + $0xe8] sm:$0xff] %v2153
        %2186 = vst [vmem:[#allocation2 + $0xf0] sm:$0xff] %v2154
        %2187 = vst [vmem:[#allocation2 + $0xf8] sm:$0xff] %v2155
        %p2188 = scmp.eq.s32.totalorder %s30, 1
        // Predicated region
        $region57: #{mlp_forward.1} parent=39 // pred_check
          %p2189 = pneg %p2188
        $region58: #{mlp_forward.1} parent=39 // pred_check_branch
          %2191 = sbr.rel (%p2189) target = $region60
        $region59: #{mlp_forward.1} parent=39 // pred_region
          %v2192 = vld [vmem:[#allocation2] sm:$0xff]
          %v2193 = vld [vmem:[#allocation2 + $0x8] sm:$0xff]
          %v2194 = vld [vmem:[#allocation2 + $0x10] sm:$0xff]
          %v2195 = vld [vmem:[#allocation2 + $0x18] sm:$0xff]
          %v2196 = vld [vmem:[#allocation2 + $0x20] sm:$0xff]
          %v2197 = vld [vmem:[#allocation2 + $0x28] sm:$0xff]
          %v2198 = vld [vmem:[#allocation2 + $0x30] sm:$0xff]
          %v2199 = vld [vmem:[#allocation2 + $0x38] sm:$0xff]
          %v2200 = vld [vmem:[#allocation2 + $0x40] sm:$0xff]
          %v2201 = vld [vmem:[#allocation2 + $0x48] sm:$0xff]
          %v2202 = vld [vmem:[#allocation2 + $0x50] sm:$0xff]
          %v2203 = vld [vmem:[#allocation2 + $0x58] sm:$0xff]
          %v2204 = vld [vmem:[#allocation2 + $0x60] sm:$0xff]
          %v2205 = vld [vmem:[#allocation2 + $0x68] sm:$0xff]
          %v2206 = vld [vmem:[#allocation2 + $0x70] sm:$0xff]
          %v2207 = vld [vmem:[#allocation2 + $0x78] sm:$0xff]
          %v2208 = vld [vmem:[#allocation2 + $0x80] sm:$0xff]
          %v2209 = vld [vmem:[#allocation2 + $0x88] sm:$0xff]
          %v2210 = vld [vmem:[#allocation2 + $0x90] sm:$0xff]
          %v2211 = vld [vmem:[#allocation2 + $0x98] sm:$0xff]
          %v2212 = vld [vmem:[#allocation2 + $0xa0] sm:$0xff]
          %v2213 = vld [vmem:[#allocation2 + $0xa8] sm:$0xff]
          %v2214 = vld [vmem:[#allocation2 + $0xb0] sm:$0xff]
          %v2215 = vld [vmem:[#allocation2 + $0xb8] sm:$0xff]
          %v2216 = vld [vmem:[#allocation2 + $0xc0] sm:$0xff]
          %v2217 = vld [vmem:[#allocation2 + $0xc8] sm:$0xff]
          %v2218 = vld [vmem:[#allocation2 + $0xd0] sm:$0xff]
          %v2219 = vld [vmem:[#allocation2 + $0xd8] sm:$0xff]
          %v2220 = vld [vmem:[#allocation2 + $0xe0] sm:$0xff]
          %v2221 = vld [vmem:[#allocation2 + $0xe8] sm:$0xff]
          %v2222 = vld [vmem:[#allocation2 + $0xf0] sm:$0xff]
          %v2223 = vld [vmem:[#allocation2 + $0xf8] sm:$0xff]
          %v2224 = vld [vmem:[%s4] sm:$0x1]
          %v2226 = vperm.slane %v2224, 0
          %v2228 = vadd.f32 %v2192, %v2226
          %v2229 = vadd.f32 %v2193, %v2226
          %v2230 = vadd.f32 %v2194, %v2226
          %v2231 = vadd.f32 %v2195, %v2226
          %v2232 = vadd.f32 %v2196, %v2226
          %v2233 = vadd.f32 %v2197, %v2226
          %v2234 = vadd.f32 %v2198, %v2226
          %v2235 = vadd.f32 %v2199, %v2226
          %v2236 = vadd.f32 %v2200, %v2226
          %v2237 = vadd.f32 %v2201, %v2226
          %v2238 = vadd.f32 %v2202, %v2226
          %v2239 = vadd.f32 %v2203, %v2226
          %v2240 = vadd.f32 %v2204, %v2226
          %v2241 = vadd.f32 %v2205, %v2226
          %v2242 = vadd.f32 %v2206, %v2226
          %v2243 = vadd.f32 %v2207, %v2226
          %v2244 = vadd.f32 %v2208, %v2226
          %v2245 = vadd.f32 %v2209, %v2226
          %v2246 = vadd.f32 %v2210, %v2226
          %v2247 = vadd.f32 %v2211, %v2226
          %v2248 = vadd.f32 %v2212, %v2226
          %v2249 = vadd.f32 %v2213, %v2226
          %v2250 = vadd.f32 %v2214, %v2226
          %v2251 = vadd.f32 %v2215, %v2226
          %v2252 = vadd.f32 %v2216, %v2226
          %v2253 = vadd.f32 %v2217, %v2226
          %v2254 = vadd.f32 %v2218, %v2226
          %v2255 = vadd.f32 %v2219, %v2226
          %v2256 = vadd.f32 %v2220, %v2226
          %v2257 = vadd.f32 %v2221, %v2226
          %v2258 = vadd.f32 %v2222, %v2226
          %v2259 = vadd.f32 %v2223, %v2226
          %2260 = vst [vmem:[%s347] sm:$0xff] %v2228
          %2261 = vst [vmem:[%s347 + $0x8] sm:$0xff] %v2229
          %2262 = vst [vmem:[%s347 + $0x10] sm:$0xff] %v2230
          %2263 = vst [vmem:[%s347 + $0x18] sm:$0xff] %v2231
          %2264 = vst [vmem:[%s347 + $0x20] sm:$0xff] %v2232
          %2265 = vst [vmem:[%s347 + $0x28] sm:$0xff] %v2233
          %2266 = vst [vmem:[%s347 + $0x30] sm:$0xff] %v2234
          %2267 = vst [vmem:[%s347 + $0x38] sm:$0xff] %v2235
          %2268 = vst [vmem:[%s347 + $0x40] sm:$0xff] %v2236
          %2269 = vst [vmem:[%s347 + $0x48] sm:$0xff] %v2237
          %2270 = vst [vmem:[%s347 + $0x50] sm:$0xff] %v2238
          %2271 = vst [vmem:[%s347 + $0x58] sm:$0xff] %v2239
          %2272 = vst [vmem:[%s347 + $0x60] sm:$0xff] %v2240
          %2273 = vst [vmem:[%s347 + $0x68] sm:$0xff] %v2241
          %2274 = vst [vmem:[%s347 + $0x70] sm:$0xff] %v2242
          %2275 = vst [vmem:[%s347 + $0x78] sm:$0xff] %v2243
          %2276 = vst [vmem:[%s347 + $0x80] sm:$0xff] %v2244
          %2277 = vst [vmem:[%s347 + $0x88] sm:$0xff] %v2245
          %2278 = vst [vmem:[%s347 + $0x90] sm:$0xff] %v2246
          %2279 = vst [vmem:[%s347 + $0x98] sm:$0xff] %v2247
          %2280 = vst [vmem:[%s347 + $0xa0] sm:$0xff] %v2248
          %2281 = vst [vmem:[%s347 + $0xa8] sm:$0xff] %v2249
          %2282 = vst [vmem:[%s347 + $0xb0] sm:$0xff] %v2250
          %2283 = vst [vmem:[%s347 + $0xb8] sm:$0xff] %v2251
          %2284 = vst [vmem:[%s347 + $0xc0] sm:$0xff] %v2252
          %2285 = vst [vmem:[%s347 + $0xc8] sm:$0xff] %v2253
          %2286 = vst [vmem:[%s347 + $0xd0] sm:$0xff] %v2254
          %2287 = vst [vmem:[%s347 + $0xd8] sm:$0xff] %v2255
          %2288 = vst [vmem:[%s347 + $0xe0] sm:$0xff] %v2256
          %2289 = vst [vmem:[%s347 + $0xe8] sm:$0xff] %v2257
          %2290 = vst [vmem:[%s347 + $0xf0] sm:$0xff] %v2258
          %2291 = vst [vmem:[%s347 + $0xf8] sm:$0xff] %v2259
        $region60: #{mlp_forward.1} parent=39 // pred_fallthru
          _
        %s2292 = sand.u32 %s170, 1
        %s2293 = scalar_lea.sflag [#allocation5], %s2292
        %s2294 = sand.u32 %s170, 1
        %s2295 = smul.addr %s2294, 256
        %s2296 = scalar_lea.vmem [#allocation9], %s2295
        // Predicated region
        $region61: #{mlp_forward.1} parent=39 // pred_check
          %p2297 = pneg %p180
        $region62: #{mlp_forward.1} parent=39 // pred_check_branch
          %2299 = sbr.rel (%p2297) target = $region64
        $region63: #{mlp_forward.1} parent=39 // pred_region
          %s2300 = smul.u32 32, %s29
          %2302 = vsyncadd %s2293, 0
          %s2303 = smul.addr %s2300, 8
          %s2304 = scalar_lea.hbm %s5, %s2303
          %s2305 = sshll.u32 %s2296, 4
          %s2306 = int_to_ptr.vmem [resolvable:$true] %s2305
          %s2307 = sshll.u32 %s2304, 4
          %s2308 = int_to_ptr.hbm [resolvable:$true] %s2307
          %2313 = dma.vmem_to_hbm [thread:$0]  %s2306, 4096, %s2308, %s2293, 128, 128, 8
        $region64: #{mlp_forward.1} parent=39 // pred_fallthru
          _
      $region40: #{mlp_forward.1} parent=5 // pred_fallthru
        _
      %p2314 = scmp.le.s32.totalorder 2, %s20
      // Predicated region
      $region65: #{mlp_forward.1} parent=5 // pred_check
        %p2315 = pneg %p2314
      $region66: #{mlp_forward.1} parent=5 // pred_check_branch
        %2317 = sbr.rel (%p2315) target = $region68
      $region67: #{mlp_forward.1} parent=5 // pred_region
        %s2318 = ssub.s32 %s20, 2
        // Predicated region
        $region69: #{mlp_forward.1} parent=67 // pred_check
          %p2319 = pneg %p186
        $region70: #{mlp_forward.1} parent=67 // pred_check_branch
          %2321 = sbr.rel (%p2319) target = $region72
        $region71: #{mlp_forward.1} parent=67 // pred_region
          %s2322 = sand.u32 %s171, 1
          %s2323 = scalar_lea.sflag [#allocation5], %s2322
          %s2324 = sand.u32 %s171, 1
          %s2325 = smul.addr %s2324, 256
          %s2326 = scalar_lea.vmem [#allocation9], %s2325
          %2328 = dma.done %s2323, 4096
        $region72: #{mlp_forward.1} parent=67 // pred_fallthru
          _
      $region68: #{mlp_forward.1} parent=5 // pred_fallthru
        _
    $region6: #{mlp_forward.1} parent=1 // loop_footer
      %s24 = sadd.s32 1, %s20
    $region7: #{mlp_forward.1} parent=1 // loop_footer_branch
      %19 = sbr.rel target = $region3
    $region8: #{mlp_forward.1} parent=1 // loop_exit
      _
    %2329 = vsyncpa [#allocation4], 1
    %s2330 = scalar_lea.sflag [#allocation4], 1
    %2331 = vsyncpa %s2330, 1
    %2332 = vsyncpa [#allocation7], 1
    %s2333 = scalar_lea.sflag [#allocation7], 1
    %2334 = vsyncpa %s2333, 1
    %2335 = vsyncpa [#allocation5], 1
    %s2336 = scalar_lea.sflag [#allocation5], 1
    %2337 = vsyncpa %s2336, 1

</llo_original>
